<compile_context>
chip_gen: v7x
topology: tpu7x:2x2x1
jax: 0.10.0
libtpu: 0.0.40
codegen_flags: <defaults>
</compile_context>

<pallas_src>
import functools
import math

import jax
import jax.numpy as jnp
from jax import lax
from jax.experimental import pallas as pl
from jax.experimental.pallas import tpu as pltpu

_MASK_VALUE = -1e30


def _pick_tile(dim, candidates):
    """Largest candidate that divides `dim`, else the full dim (always legal)."""
    for c in candidates:
        if dim % c == 0:
            return c
    return dim


@functools.lru_cache(maxsize=None)
def _hw_caps():
    """Generation-aware tile caps and VMEM budget."""
    try:
        kind = jax.devices()[0].device_kind.lower()
    except Exception:  # pragma: no cover - no backend yet
        kind = ""
    if "v7" in kind:
        # v7x: only 64 MiB physical VMEM per core -> explicit conservative limit.
        return {"mm": 1024, "bq": 512, "vmem": 48 * 1024 * 1024}
    if any(v in kind for v in ("v2", "v3", "v4", "v5")):
        # v5e ridge ~240 FLOP/byte: 512 tiles already reach the roofline.
        return {"mm": 512, "bq": 256, "vmem": 64 * 1024 * 1024}
    # v6e and default.
    return {"mm": 1024, "bq": 512, "vmem": 64 * 1024 * 1024}


# ----------------------------- tiled linear (matmul) kernel -----------------------------

def _matmul_kernel(x_ref, w_ref, o_ref, acc_ref):
    @pl.when(pl.program_id(2) == 0)
    def _():
        acc_ref[...] = jnp.zeros(acc_ref.shape, acc_ref.dtype)

    acc_ref[...] += jnp.dot(
        x_ref[...], w_ref[...], preferred_element_type=jnp.float32
    )

    @pl.when(pl.program_id(2) == pl.num_programs(2) - 1)
    def _():
        o_ref[...] = acc_ref[...].astype(o_ref.dtype)


def linear(x2d, w_t):
    """x2d: (M, K) bf16.  w_t: (K, N) pre-transposed bf16 weight.  Returns x2d @ w_t."""
    M, K = x2d.shape
    K2, N = w_t.shape
    assert K2 == K
    caps = _hw_caps()
    mm = caps["mm"]
    tm = _pick_tile(M, tuple(t for t in (1024, 512, 256, 128, 64, 32, 16, 8) if t <= mm))
    tn = _pick_tile(N, tuple(t for t in (1024, 512, 256, 128) if t <= mm))
    tk = _pick_tile(K, (512, 256, 128))
    grid = (M // tm, N // tn, K // tk)
    item = x2d.dtype.itemsize
    cost = pl.CostEstimate(
        flops=2 * M * N * K,
        transcendentals=0,
        bytes_accessed=item * (M * K + K * N + M * N),
    )
    return pl.pallas_call(
        _matmul_kernel,
        out_shape=jax.ShapeDtypeStruct((M, N), x2d.dtype),
        grid=grid,
        in_specs=[
            pl.BlockSpec((tm, tk), lambda i, j, k: (i, k)),
            pl.BlockSpec((tk, tn), lambda i, j, k: (k, j)),
        ],
        out_specs=pl.BlockSpec((tm, tn), lambda i, j, k: (i, j)),
        scratch_shapes=[pltpu.VMEM((tm, tn), jnp.float32)],
        compiler_params=pltpu.CompilerParams(
            dimension_semantics=("parallel", "parallel", "arbitrary"),
            vmem_limit_bytes=caps["vmem"],
        ),
        cost_estimate=cost,
    )(x2d, w_t)


# ----------------------------- rotary embedding kernel -----------------------------

def _rope_kernel(x_ref, cos_ref, sin_ref, o_ref):
    # x_ref: (1, tq, H, D) bf16 in half-split (rotate-half) channel order.
    # cos/sin: (tq, D//2) fp32 frequency tables.
    x = x_ref[0]                                     # (tq, H, D)
    c = cos_ref[...].astype(x.dtype)[:, None, :]     # (tq, 1, D//2) broadcast over heads
    s = sin_ref[...].astype(x.dtype)[:, None, :]
    dh = x.shape[-1] // 2
    x1 = x[..., :dh]
    x2 = x[..., dh:]
    # rotate-half rotation (exactly the interleaved convention after the init-time
    # channel permutation of wq/wk): out = [x1*c - x2*s, x2*c + x1*s]
    o_ref[0] = jnp.concatenate([x1 * c - x2 * s, x2 * c + x1 * s], axis=-1)


def apply_rotary_emb_pallas(x, cos, sin):
    """x: (bs, S, H, D) bf16 (half-split channel order).  cos/sin: (S, D//2) fp32."""
    bs, S, H, D = x.shape
    assert D % 2 == 0
    caps = _hw_caps()
    tq = _pick_tile(S, (512, 256, 128, 64, 32, 16, 8))
    grid = (bs, S // tq)
    x_spec = pl.BlockSpec((1, tq, H, D), lambda b, si: (b, si, 0, 0))
    cs_spec = pl.BlockSpec((tq, D // 2), lambda b, si: (si, 0))
    return pl.pallas_call(
        _rope_kernel,
        out_shape=jax.ShapeDtypeStruct(x.shape, x.dtype),
        grid=grid,
        in_specs=[x_spec, cs_spec, cs_spec],
        out_specs=x_spec,
        compiler_params=pltpu.CompilerParams(
            dimension_semantics=("parallel", "parallel"),
            vmem_limit_bytes=caps["vmem"],
        ),
    )(x, cos, sin)


# ----------------------------- flash attention kernel (GQA-packed) -----------------------------

def _flash_attn_kernel(q_ref, k_ref, v_ref, o_ref, m_sc, l_sc, acc_sc, *,
                       causal, n_rep, head_dim, block_q, block_k):
    qi = pl.program_id(2)
    ki = pl.program_id(3)
    nk = pl.num_programs(3)
    D = head_dim

    @pl.when(ki == 0)
    def _():
        m_sc[...] = jnp.full(m_sc.shape, -jnp.inf, m_sc.dtype)
        l_sc[...] = jnp.zeros(l_sc.shape, l_sc.dtype)
        acc_sc[...] = jnp.zeros(acc_sc.shape, acc_sc.dtype)

    def compute():
        k = k_ref[0]                         # (bk, D) bf16 — shared by all n_rep heads
        v = v_ref[0]                         # (bk, D) bf16
        if causal:
            # Hoisted once per grid step (shared across the n_rep heads).
            # TODO(synk): wrap the per-head select in a runtime branch keyed on
            # "tile crosses the diagonal" to skip it on fully-below-diag tiles.
            row = qi * block_q + lax.broadcasted_iota(jnp.int32, (block_q, block_k), 0)
            col = ki * block_k + lax.broadcasted_iota(jnp.int32, (block_q, block_k), 1)
            allowed = col <= row
        for r in range(n_rep):               # static unroll over the query heads of this group
            # softmax scale is pre-baked into wq, so no per-score multiply here.
            q_r = q_ref[0, :, r * D:(r + 1) * D]          # (bq, D) bf16
            s = lax.dot_general(
                q_r, k, (((1,), (1,)), ((), ())),
                preferred_element_type=jnp.float32,
            )                                              # (bq, bk) fp32
            if causal:
                s = jnp.where(allowed, s, _MASK_VALUE)
            m_prev = m_sc[r]                               # (bq, 128), lane-replicated
            l_prev = l_sc[r]
            m_cur = jnp.max(s, axis=-1, keepdims=True)     # (bq, 1)
            m_next = jnp.maximum(m_prev, m_cur)            # (bq, 128)
            alpha = jnp.exp(m_prev - m_next)               # (bq, 128)
            m_b = m_next if block_k == 128 else m_next[:, :1]
            p = jnp.exp(s - m_b)                           # (bq, bk)
            l_sc[r] = alpha * l_prev + jnp.sum(p, axis=-1, keepdims=True)
            m_sc[r] = m_next
            a_b = alpha if D == 128 else alpha[:, :1]
            acc_sc[r] = a_b * acc_sc[r] + jnp.dot(
                p.astype(v.dtype), v, preferred_element_type=jnp.float32
            )

    if causal:
        # Skip kv tiles that lie entirely above the diagonal for this q tile.
        pl.when(ki * block_k <= qi * block_q + block_q - 1)(compute)
    else:
        compute()

    @pl.when(ki == nk - 1)
    def _():
        for r in range(n_rep):
            inv_l = pl.reciprocal(l_sc[r], approx=False)   # (bq, 128)
            inv_b = inv_l if D == 128 else inv_l[:, :1]
            o_ref[0, :, r * D:(r + 1) * D] = (acc_sc[r] * inv_b).astype(o_ref.dtype)


def flash_attention(q, k, v, *, n_rep, head_dim, causal, block_q=None, block_k=None):
    """q: (bs, S, H*D).  k, v: (bs, S, H_kv*D).  Returns (bs, S, H*D).

    GQA is realized by the grid/index_maps: grid axis 1 is the kv-head group and
    each K/V tile is reused by the n_rep query heads of that group.
    """
    bs, S, QD = q.shape
    D = head_dim
    H = QD // D
    Hkv = H // n_rep
    assert D % 128 == 0 or Hkv == 1, "head_dim must be a multiple of 128 (TPU lane width)"
    caps = _hw_caps()
    bq = block_q if block_q is not None else _pick_tile(
        S, tuple(t for t in (512, 256, 128, 64, 32, 16, 8) if t <= caps["bq"]))
    bk = block_k if block_k is not None else _pick_tile(S, (256, 128, 64, 32, 16, 8))
    assert S % bq == 0 and S % bk == 0
    nq, nk = S // bq, S // bk
    grid = (bs, Hkv, nq, nk)

    if causal:
        # Clamp the kv block index for tiles above the diagonal: the repeated
        # block index makes the pipeline elide their DMAs (compute is skipped
        # by pl.when inside the kernel).
        def kv_idx(b, g, qi, ki):
            return (b, jnp.minimum(ki, (qi * bq + bq - 1) // bk), g)
    else:
        def kv_idx(b, g, qi, ki):
            return (b, ki, g)

    q_spec = pl.BlockSpec((1, bq, n_rep * D), lambda b, g, qi, ki: (b, qi, g))
    kv_spec = pl.BlockSpec((1, bk, D), kv_idx)
    o_spec = pl.BlockSpec((1, bq, n_rep * D), lambda b, g, qi, ki: (b, qi, g))

    kernel = functools.partial(
        _flash_attn_kernel, causal=causal, n_rep=n_rep, head_dim=D,
        block_q=bq, block_k=bk,
    )
    flops = 4 * bs * H * S * S * D
    trans = bs * H * S * S
    if causal:
        flops //= 2
        trans //= 2
    cost = pl.CostEstimate(
        flops=flops,
        transcendentals=trans,
        bytes_accessed=2 * (q.size + k.size + v.size + q.size),
    )
    return pl.pallas_call(
        kernel,
        out_shape=jax.ShapeDtypeStruct(q.shape, q.dtype),
        grid=grid,
        in_specs=[q_spec, kv_spec, kv_spec],
        out_specs=o_spec,
        scratch_shapes=[
            pltpu.VMEM((n_rep, bq, 128), jnp.float32),   # m (lane-replicated)
            pltpu.VMEM((n_rep, bq, 128), jnp.float32),   # l (lane-replicated)
            pltpu.VMEM((n_rep, bq, D), jnp.float32),     # acc
        ],
        compiler_params=pltpu.CompilerParams(
            dimension_semantics=("parallel", "parallel", "parallel", "arbitrary"),
            vmem_limit_bytes=caps["vmem"],
        ),
        cost_estimate=cost,
    )(q, k, v)


# ----------------------------- module wrapper -----------------------------

class AttentionPallas:
    def __init__(self, dim, n_heads, n_kv_heads, key):
        self.n_heads = n_heads
        self.n_kv_heads = n_kv_heads
        self.n_rep = n_heads // n_kv_heads
        self.head_dim = dim // n_heads
        self.scale = 1.0 / math.sqrt(self.head_dim)  # flex_attention default scale
        H, Hkv, D = n_heads, n_kv_heads, self.head_dim
        k1, k2, k3, k4 = jax.random.split(key, 4)

        def trunc(k, shape, std=0.02):
            # trunc_normal_(mean=0, std=std), truncated at +/- 2 std
            return std * jax.random.truncated_normal(k, -2.0, 2.0, shape, jnp.float32)

        # torch nn.Linear weight layout is (out, in); keep fp32 originals for the
        # pure-JAX reference check.
        wq = trunc(k1, (H * D, dim))
        wk = trunc(k2, (Hkv * D, dim))
        wv = trunc(k3, (Hkv * D, dim))
        wo = trunc(k4, (dim, H * D))
        self.wq_ref, self.wk_ref, self.wv_ref, self.wo_ref = wq, wk, wv, wo

        # Half-split (rotate-half) channel permutation per head: even dims first,
        # then odd.  Applied consistently to q and k it leaves attention scores
        # unchanged but lets the RoPE kernel avoid interleave shuffles.
        perm = jnp.concatenate([jnp.arange(0, D, 2), jnp.arange(1, D, 2)])
        wq_p = wq.reshape(H, D, dim)[:, perm, :].reshape(H * D, dim)
        wk_p = wk.reshape(Hkv, D, dim)[:, perm, :].reshape(Hkv * D, dim)

        # Pre-transpose ONCE at init, bake the softmax scale into wq, store bf16.
        self.wq_t = jnp.transpose(wq_p * self.scale).astype(jnp.bfloat16)
        self.wk_t = jnp.transpose(wk_p).astype(jnp.bfloat16)
        self.wv_t = jnp.transpose(wv).astype(jnp.bfloat16)
        self.wo_t = jnp.transpose(wo).astype(jnp.bfloat16)

    def __call__(self, x, cos, sin, causal=True, block_q=None, block_k=None):
        bs, S, dim = x.shape
        H, Hkv, D = self.n_heads, self.n_kv_heads, self.head_dim
        x2d = x.reshape(bs * S, dim).astype(jnp.bfloat16)

        # TODO(synk): the three projections could be fused into one pallas_call
        # (concatenated output dim) to amortize grid-step overhead.
        q2d = linear(x2d, self.wq_t)          # (M, H*D)  bf16, scale pre-applied
        k2d = linear(x2d, self.wk_t)          # (M, Hkv*D)
        v2d = linear(x2d, self.wv_t)          # (M, Hkv*D)

        cos_t, sin_t = cos[:S], sin[:S]       # (S, D//2) fp32 tables
        q = apply_rotary_emb_pallas(q2d.reshape(bs, S, H, D), cos_t, sin_t)
        k = apply_rotary_emb_pallas(k2d.reshape(bs, S, Hkv, D), cos_t, sin_t)

        # No head/seq transposes: the attention kernel consumes the projection
        # layout (bs, S, heads*D) directly and writes its output in the layout
        # wo consumes (all reshapes below are free/contiguous).
        o = flash_attention(
            q.reshape(bs, S, H * D),
            k.reshape(bs, S, Hkv * D),
            v2d.reshape(bs, S, Hkv * D),
            n_rep=self.n_rep, head_dim=D, causal=causal,
            block_q=block_q, block_k=block_k,
        )                                     # (bs, S, H*D) bf16

        out = linear(o.reshape(bs * S, H * D), self.wo_t)
        return out.reshape(bs, S, dim).astype(x.dtype)


def precompute_cos_sin(head_dim, max_seq_len, theta=10000.0):
    freqs = 1.0 / (theta ** (jnp.arange(0, head_dim, 2, dtype=jnp.float32) / head_dim))
    t = jnp.arange(max_seq_len, dtype=jnp.float32)
    angles = jnp.outer(t, freqs)              # (max_seq_len, head_dim//2)
    return jnp.cos(angles), jnp.sin(angles)


# ----------------------------- pure-JAX reference (correctness check) -----------------------------

def reference_forward(attn, x, cos, sin, causal=True):
    """Original torch convention: unpermuted weights, interleaved RoPE, fp32 math.

    Weights / input are quantized to bf16 (as the kernel path does) so the check
    isolates kernel bugs from intentional precision loss.
    """
    bs, S, dim = x.shape
    H, Hkv, D, n_rep = attn.n_heads, attn.n_kv_heads, attn.head_dim, attn.n_rep
    f32 = jnp.float32
    xb = x.astype(jnp.bfloat16).astype(f32)
    wq = attn.wq_ref.astype(jnp.bfloat16).astype(f32)
    wk = attn.wk_ref.astype(jnp.bfloat16).astype(f32)
    wv = attn.wv_ref.astype(jnp.bfloat16).astype(f32)
    wo = attn.wo_ref.astype(jnp.bfloat16).astype(f32)

    x2d = xb.reshape(bs * S, dim)
    xq = (x2d @ wq.T).reshape(bs, S, H, D)
    xk = (x2d @ wk.T).reshape(bs, S, Hkv, D)
    xv = (x2d @ wv.T).reshape(bs, S, Hkv, D)

    def rope(t):
        te, to = t[..., 0::2], t[..., 1::2]
        c = cos[:S][None, :, None, :]
        s = sin[:S][None, :, None, :]
        oe = te * c - to * s
        oo = te * s + to * c
        return jnp.stack([oe, oo], axis=-1).reshape(t.shape)

    xq, xk = rope(xq), rope(xk)
    q = jnp.transpose(xq, (0, 2, 1, 3))
    k = jnp.repeat(jnp.transpose(xk, (0, 2, 1, 3)), n_rep, axis=1)
    v = jnp.repeat(jnp.transpose(xv, (0, 2, 1, 3)), n_rep, axis=1)
    s = jnp.einsum("bhqd,bhkd->bhqk", q, k) * attn.scale
    if causal:
        row = jnp.arange(S)[:, None]
        col = jnp.arange(S)[None, :]
        s = jnp.where(col <= row, s, _MASK_VALUE)
    p = jax.nn.softmax(s, axis=-1)
    o = jnp.einsum("bhqk,bhkd->bhqd", p, v)
    o2d = jnp.transpose(o, (0, 2, 1, 3)).reshape(bs * S, H * D)
    return (o2d @ wo.T).reshape(bs, S, dim)


if __name__ == "__main__":
    key = jax.random.PRNGKey(0)
    kx, kw = jax.random.split(key)

    # Small ModelArgs-consistent config.  head_dim = 128 (the TPU lane width, as
    # in real Llama configs) so all BlockSpec lane constraints are met; GQA with
    # n_rep = 2 exercises the group index_maps and the in-kernel head loop.
    bs, seqlen = 2, 64
    dim, n_heads, n_kv_heads = 512, 4, 2      # head_dim = 128, n_rep = 2
    max_seq_len = 128

    attn = AttentionPallas(dim, n_heads, n_kv_heads, kw)
    x = jax.random.normal(kx, (bs, seqlen, dim), jnp.float32)
    cos, sin = precompute_cos_sin(dim // n_heads, max_seq_len)

    # Causal, with small attention tiles so the multi-tile online-softmax,
    # causal DMA-elision / compute-skip, and GQA paths are all exercised.
    out_c = attn(x, cos, sin, causal=True, block_q=16, block_k=16)
    out_c = jax.block_until_ready(out_c)
    assert out_c.shape == (bs, seqlen, dim)
    assert bool(jnp.all(jnp.isfinite(out_c)))
    ref_c = reference_forward(attn, x, cos, sin, causal=True)
    err_c = float(jnp.max(jnp.abs(out_c - ref_c)))
    assert jnp.allclose(out_c, ref_c, rtol=5e-2, atol=2e-2), f"causal max abs err {err_c}"

    # Non-causal (mask=None) path with default (full-extent) tiles.
    out_f = attn(x, cos, sin, causal=False)
    out_f = jax.block_until_ready(out_f)
    ref_f = reference_forward(attn, x, cos, sin, causal=False)
    err_f = float(jnp.max(jnp.abs(out_f - ref_f)))
    assert jnp.allclose(out_f, ref_f, rtol=5e-2, atol=2e-2), f"full max abs err {err_f}"

    print("KERNEL_OK")
</pallas_src>

<mosaic_0001>
module attributes {stable_mosaic.version = 11 : i64} {
  func.func @_matmul_kernel(%arg0: i32, %arg1: i32, %arg2: i32, %arg3: memref<128x512xbf16, #tpu.memory_space<vmem>>, %arg4: memref<512x512xbf16, #tpu.memory_space<vmem>>, %arg5: memref<128x512xbf16, #tpu.memory_space<vmem>>, %arg6: memref<128x512xf32, #tpu.memory_space<vmem>>) attributes {dimension_semantics = [#tpu.dimension_semantics<parallel>, #tpu.dimension_semantics<parallel>, #tpu.dimension_semantics<arbitrary>], iteration_bounds = array<i64: 1, 1, 1>, scalar_prefetch = 0 : i64, scratch_operands = 1 : i64, tpu.core_type = #tpu.core_type<tc>, window_params = [{transform_indices = @transform_0, window_bounds = array<i64: 128, 512>}, {transform_indices = @transform_1, window_bounds = array<i64: 512, 512>}, {transform_indices = @transform_2, window_bounds = array<i64: 128, 512>}]} {
    %c0_i32 = arith.constant 0 : i32
    %0 = arith.cmpi eq, %arg2, %c0_i32 : i32
    %1 = arith.extui %0 : i1 to i32
    %c0_i32_0 = arith.constant 0 : i32
    %2 = arith.cmpi ne, %1, %c0_i32_0 : i32
    scf.if %2 {
      %cst_10 = arith.constant 0.000000e+00 : f32
      %12 = vector.broadcast %cst_10 : f32 to vector<128x512xf32>
      %c0_11 = arith.constant 0 : index
      %c0_12 = arith.constant 0 : index
      %13 = vector.load %arg6[%c0_11, %c0_12] : memref<128x512xf32, #tpu.memory_space<vmem>>, vector<128x512xf32>
      tpu.vector_store %arg6[%c0_11, %c0_12], %12 {strides = array<i32>} : memref<128x512xf32, #tpu.memory_space<vmem>>, vector<128x512xf32>,
    } else {
    }
    %c0 = arith.constant 0 : index
    %c0_1 = arith.constant 0 : index
    %3 = vector.load %arg6[%c0, %c0_1] : memref<128x512xf32, #tpu.memory_space<vmem>>, vector<128x512xf32>
    %c0_2 = arith.constant 0 : index
    %c0_3 = arith.constant 0 : index
    %4 = vector.load %arg3[%c0_2, %c0_3] : memref<128x512xbf16, #tpu.memory_space<vmem>>, vector<128x512xbf16>
    %c0_4 = arith.constant 0 : index
    %c0_5 = arith.constant 0 : index
    %5 = vector.load %arg4[%c0_4, %c0_5] : memref<512x512xbf16, #tpu.memory_space<vmem>>, vector<512x512xbf16>
    %cst = arith.constant dense<0.000000e+00> : vector<128x512xf32>
    %6 = tpu.matmul %4, %5, %cst {dimension_numbers = #tpu.dot_dimension_numbers<[1], [0], [0], [1], [0, 0, 1, 1], [], []>} : vector<128x512xbf16>, vector<512x512xbf16>, vector<128x512xf32> -> vector<128x512xf32>
    %7 = arith.addf %3, %6 : vector<128x512xf32>
    %c0_6 = arith.constant 0 : index
    %c0_7 = arith.constant 0 : index
    %8 = vector.load %arg6[%c0_6, %c0_7] : memref<128x512xf32, #tpu.memory_space<vmem>>, vector<128x512xf32>
    tpu.vector_store %arg6[%c0_6, %c0_7], %7 {strides = array<i32>} : memref<128x512xf32, #tpu.memory_space<vmem>>, vector<128x512xf32>,
    %c0_i32_8 = arith.constant 0 : i32
    %9 = arith.cmpi eq, %arg2, %c0_i32_8 : i32
    %10 = arith.extui %9 : i1 to i32
    %c0_i32_9 = arith.constant 0 : i32
    %11 = arith.cmpi ne, %10, %c0_i32_9 : i32
    scf.if %11 {
      %c0_10 = arith.constant 0 : index
      %c0_11 = arith.constant 0 : index
      %12 = vector.load %arg6[%c0_10, %c0_11] : memref<128x512xf32, #tpu.memory_space<vmem>>, vector<128x512xf32>
      %13 = arith.truncf %12 : vector<128x512xf32> to vector<128x512xbf16>
      %c0_12 = arith.constant 0 : index
      %c0_13 = arith.constant 0 : index
      %14 = vector.load %arg5[%c0_12, %c0_13] : memref<128x512xbf16, #tpu.memory_space<vmem>>, vector<128x512xbf16>
      tpu.vector_store %arg5[%c0_12, %c0_13], %13 {strides = array<i32>} : memref<128x512xbf16, #tpu.memory_space<vmem>>, vector<128x512xbf16>,
    } else {
    }
    return
  }
  func.func @transform_0(%arg0: i32, %arg1: i32, %arg2: i32) -> (i32, i32) {
    %c0_i32 = arith.constant 0 : i32
    return %arg0, %arg2 : i32, i32
  }
  func.func @transform_1(%arg0: i32, %arg1: i32, %arg2: i32) -> (i32, i32) {
    %c0_i32 = arith.constant 0 : i32
    return %arg2, %arg1 : i32, i32
  }
  func.func @transform_2(%arg0: i32, %arg1: i32, %arg2: i32) -> (i32, i32) {
    %c0_i32 = arith.constant 0 : i32
    return %arg0, %arg1 : i32, i32
  }
}

</mosaic_0001>

<llo_original>
// kernel: tpu_custom_call.1
$region0: #{tpu_custom_call.1}
  #allocation0 [shape = 'u32[]', space=smem, size = 0x4, offset = 0x4, fixed_abs, tag = 'smem constant byte address 0x4 - core index']
  #allocation1 [shape = 'u32[144,128]{1,0:T(1,128)}', space=vmem, size = 0x12000, scoped, tag = 'internal scratch']
  #allocation2 [shape = 'f32[128,512]{1,0:T(8,128)}', space=vmem, size = 0x40000, scoped, tag = 'scratch operand']
  %s0 = inlined_call_operand.hbm [shape: bf16[128,512], index: 0, kind: input, shape index: {}]
  %s1 = inlined_call_operand.hbm [shape: bf16[512,512], index: 1, kind: input, shape index: {}]
  %s2 = inlined_call_operand.hbm [shape: bf16[128,512], index: 2, kind: output, shape index: {}]
  %s3 = sld [smem:[#allocation0]]
  $region34: #{tpu_custom_call.1} parent=0
    _
  %s5 = ssub.s32 1, %s3
  %s6 = scalar_select 0, %s5, %s3
  $region1: #{tpu_custom_call.1} parent=0
    #allocation3 [shape = 'u8[131072]{0}', space=vmem, size = 0x20000, scoped, tag = 'input window, operand 0, single buffered']
    #allocation4 [shape = 's32[1]{0}', space=sflag, size = 0x4, scoped, tag = 'scoped memory for tpu_custom_call.1']
    #allocation5 [shape = 's32[1]{0}', space=sflag, size = 0x4, scoped, tag = 'scoped memory for tpu_custom_call.1']
    #allocation6 [shape = 'u8[524288]{0}', space=vmem, size = 0x80000, scoped, tag = 'input window, operand 1, single buffered']
    #allocation7 [shape = 's32[1]{0}', space=sflag, size = 0x4, scoped, tag = 'scoped memory for tpu_custom_call.1']
    #allocation8 [shape = 'u8[131072]{0}', space=vmem, size = 0x20000, scoped, tag = 'output window, operand 0, single buffered']
    %7 = vsyncpa [#allocation4], 0
    %8 = vsyncpa [#allocation7], 0
    %9 = vsyncpa [#allocation5], 0
    // Predicated region
    $region2: #{tpu_custom_call.1} parent=1 // pred_check
      _
    $region3: #{tpu_custom_call.1} parent=1 // pred_check_branch
      %11 = sbr.rel (0) target = $region5
    $region4: #{tpu_custom_call.1} parent=1 // pred_region
      %s13 = ssub.s32 4096, 4096
      %14 = vsyncadd [#allocation4], %s13
      %s15 = sshll.u32 [#allocation3], 4
      %s16 = int_to_ptr.vmem [resolvable:$true] %s15
      %21 = dma.hbm_to_vmem [thread:$0]  %s0, 4096, %s16, [#allocation4], 256, 256, 16
    $region5: #{tpu_custom_call.1} parent=1 // pred_fallthru
      _
    // Predicated region
    $region6: #{tpu_custom_call.1} parent=1 // pred_check
      _
    $region7: #{tpu_custom_call.1} parent=1 // pred_check_branch
      %23 = sbr.rel (0) target = $region9
    $region8: #{tpu_custom_call.1} parent=1 // pred_region
      %s25 = ssub.s32 16384, 16384
      %26 = vsyncadd [#allocation7], %s25
      %s27 = sshll.u32 [#allocation6], 4
      %s28 = int_to_ptr.vmem [resolvable:$true] %s27
      %33 = dma.hbm_to_vmem [thread:$0]  %s1, 16384, %s28, [#allocation7], 256, 256, 16
    $region9: #{tpu_custom_call.1} parent=1 // pred_fallthru
      _
    // Predicated region
    $region10: #{tpu_custom_call.1} parent=1 // pred_check
      _
    $region11: #{tpu_custom_call.1} parent=1 // pred_check_branch
      %35 = sbr.rel (0) target = $region13
    $region12: #{tpu_custom_call.1} parent=1 // pred_region
      %36 = dma.done [#allocation4], 4096
    $region13: #{tpu_custom_call.1} parent=1 // pred_fallthru
      _
    // Predicated region
    $region14: #{tpu_custom_call.1} parent=1 // pred_check
      _
    $region15: #{tpu_custom_call.1} parent=1 // pred_check_branch
      %38 = sbr.rel (0) target = $region17
    $region16: #{tpu_custom_call.1} parent=1 // pred_region
      %39 = dma.done [#allocation7], 16384
    $region17: #{tpu_custom_call.1} parent=1 // pred_fallthru
      _
    %p40 = scmp.eq.s32.totalorder 0, 0
    // Predicated region
    $region18: #{tpu_custom_call.1} parent=1 // pred_check
      %p41 = pneg %p40
    $region19: #{tpu_custom_call.1} parent=1 // pred_check_branch
      %43 = sbr.rel (%p41) target = $region21
    $region20: #{tpu_custom_call.1} parent=1 // pred_region
      %44 = vst [vmem:[#allocation2] sm:$0xff] 0.0
      %45 = vst [vmem:[#allocation2 + $0x8] sm:$0xff] 0.0
      %46 = vst [vmem:[#allocation2 + $0x10] sm:$0xff] 0.0
      %47 = vst [vmem:[#allocation2 + $0x18] sm:$0xff] 0.0
      %48 = vst [vmem:[#allocation2 + $0x20] sm:$0xff] 0.0
      %49 = vst [vmem:[#allocation2 + $0x28] sm:$0xff] 0.0
      %50 = vst [vmem:[#allocation2 + $0x30] sm:$0xff] 0.0
      %51 = vst [vmem:[#allocation2 + $0x38] sm:$0xff] 0.0
      %52 = vst [vmem:[#allocation2 + $0x40] sm:$0xff] 0.0
      %53 = vst [vmem:[#allocation2 + $0x48] sm:$0xff] 0.0
      %54 = vst [vmem:[#allocation2 + $0x50] sm:$0xff] 0.0
      %55 = vst [vmem:[#allocation2 + $0x58] sm:$0xff] 0.0
      %56 = vst [vmem:[#allocation2 + $0x60] sm:$0xff] 0.0
      %57 = vst [vmem:[#allocation2 + $0x68] sm:$0xff] 0.0
      %58 = vst [vmem:[#allocation2 + $0x70] sm:$0xff] 0.0
      %59 = vst [vmem:[#allocation2 + $0x78] sm:$0xff] 0.0
      %60 = vst [vmem:[#allocation2 + $0x80] sm:$0xff] 0.0
      %61 = vst [vmem:[#allocation2 + $0x88] sm:$0xff] 0.0
      %62 = vst [vmem:[#allocation2 + $0x90] sm:$0xff] 0.0
      %63 = vst [vmem:[#allocation2 + $0x98] sm:$0xff] 0.0
      %64 = vst [vmem:[#allocation2 + $0xa0] sm:$0xff] 0.0
      %65 = vst [vmem:[#allocation2 + $0xa8] sm:$0xff] 0.0
      %66 = vst [vmem:[#allocation2 + $0xb0] sm:$0xff] 0.0
      %67 = vst [vmem:[#allocation2 + $0xb8] sm:$0xff] 0.0
      %68 = vst [vmem:[#allocation2 + $0xc0] sm:$0xff] 0.0
      %69 = vst [vmem:[#allocation2 + $0xc8] sm:$0xff] 0.0
      %70 = vst [vmem:[#allocation2 + $0xd0] sm:$0xff] 0.0
      %71 = vst [vmem:[#allocation2 + $0xd8] sm:$0xff] 0.0
      %72 = vst [vmem:[#allocation2 + $0xe0] sm:$0xff] 0.0
      %73 = vst [vmem:[#allocation2 + $0xe8] sm:$0xff] 0.0
      %74 = vst [vmem:[#allocation2 + $0xf0] sm:$0xff] 0.0
      %75 = vst [vmem:[#allocation2 + $0xf8] sm:$0xff] 0.0
      %76 = vst [vmem:[#allocation2 + $0x100] sm:$0xff] 0.0
      %77 = vst [vmem:[#allocation2 + $0x108] sm:$0xff] 0.0
      %78 = vst [vmem:[#allocation2 + $0x110] sm:$0xff] 0.0
      %79 = vst [vmem:[#allocation2 + $0x118] sm:$0xff] 0.0
      %80 = vst [vmem:[#allocation2 + $0x120] sm:$0xff] 0.0
      %81 = vst [vmem:[#allocation2 + $0x128] sm:$0xff] 0.0
      %82 = vst [vmem:[#allocation2 + $0x130] sm:$0xff] 0.0
      %83 = vst [vmem:[#allocation2 + $0x138] sm:$0xff] 0.0
      %84 = vst [vmem:[#allocation2 + $0x140] sm:$0xff] 0.0
      %85 = vst [vmem:[#allocation2 + $0x148] sm:$0xff] 0.0
      %86 = vst [vmem:[#allocation2 + $0x150] sm:$0xff] 0.0
      %87 = vst [vmem:[#allocation2 + $0x158] sm:$0xff] 0.0
      %88 = vst [vmem:[#allocation2 + $0x160] sm:$0xff] 0.0
      %89 = vst [vmem:[#allocation2 + $0x168] sm:$0xff] 0.0
      %90 = vst [vmem:[#allocation2 + $0x170] sm:$0xff] 0.0
      %91 = vst [vmem:[#allocation2 + $0x178] sm:$0xff] 0.0
      %92 = vst [vmem:[#allocation2 + $0x180] sm:$0xff] 0.0
      %93 = vst [vmem:[#allocation2 + $0x188] sm:$0xff] 0.0
      %94 = vst [vmem:[#allocation2 + $0x190] sm:$0xff] 0.0
      %95 = vst [vmem:[#allocation2 + $0x198] sm:$0xff] 0.0
      %96 = vst [vmem:[#allocation2 + $0x1a0] sm:$0xff] 0.0
      %97 = vst [vmem:[#allocation2 + $0x1a8] sm:$0xff] 0.0
      %98 = vst [vmem:[#allocation2 + $0x1b0] sm:$0xff] 0.0
      %99 = vst [vmem:[#allocation2 + $0x1b8] sm:$0xff] 0.0
      %100 = vst [vmem:[#allocation2 + $0x1c0] sm:$0xff] 0.0
      %101 = vst [vmem:[#allocation2 + $0x1c8] sm:$0xff] 0.0
      %102 = vst [vmem:[#allocation2 + $0x1d0] sm:$0xff] 0.0
      %103 = vst [vmem:[#allocation2 + $0x1d8] sm:$0xff] 0.0
      %104 = vst [vmem:[#allocation2 + $0x1e0] sm:$0xff] 0.0
      %105 = vst [vmem:[#allocation2 + $0x1e8] sm:$0xff] 0.0
      %106 = vst [vmem:[#allocation2 + $0x1f0] sm:$0xff] 0.0
      %107 = vst [vmem:[#allocation2 + $0x1f8] sm:$0xff] 0.0
    $region21: #{tpu_custom_call.1} parent=1 // pred_fallthru
      _
    %v108 = vld [vmem:[#allocation2] sm:$0xff]
    %v109 = vld [vmem:[#allocation2 + $0x8] sm:$0xff]
    %v110 = vld [vmem:[#allocation2 + $0x10] sm:$0xff]
    %v111 = vld [vmem:[#allocation2 + $0x18] sm:$0xff]
    %v112 = vld [vmem:[#allocation2 + $0x20] sm:$0xff]
    %v113 = vld [vmem:[#allocation2 + $0x28] sm:$0xff]
    %v114 = vld [vmem:[#allocation2 + $0x30] sm:$0xff]
    %v115 = vld [vmem:[#allocation2 + $0x38] sm:$0xff]
    %v116 = vld [vmem:[#allocation2 + $0x40] sm:$0xff]
    %v117 = vld [vmem:[#allocation2 + $0x48] sm:$0xff]
    %v118 = vld [vmem:[#allocation2 + $0x50] sm:$0xff]
    %v119 = vld [vmem:[#allocation2 + $0x58] sm:$0xff]
    %v120 = vld [vmem:[#allocation2 + $0x60] sm:$0xff]
    %v121 = vld [vmem:[#allocation2 + $0x68] sm:$0xff]
    %v122 = vld [vmem:[#allocation2 + $0x70] sm:$0xff]
    %v123 = vld [vmem:[#allocation2 + $0x78] sm:$0xff]
    %v124 = vld [vmem:[#allocation2 + $0x80] sm:$0xff]
    %v125 = vld [vmem:[#allocation2 + $0x88] sm:$0xff]
    %v126 = vld [vmem:[#allocation2 + $0x90] sm:$0xff]
    %v127 = vld [vmem:[#allocation2 + $0x98] sm:$0xff]
    %v128 = vld [vmem:[#allocation2 + $0xa0] sm:$0xff]
    %v129 = vld [vmem:[#allocation2 + $0xa8] sm:$0xff]
    %v130 = vld [vmem:[#allocation2 + $0xb0] sm:$0xff]
    %v131 = vld [vmem:[#allocation2 + $0xb8] sm:$0xff]
    %v132 = vld [vmem:[#allocation2 + $0xc0] sm:$0xff]
    %v133 = vld [vmem:[#allocation2 + $0xc8] sm:$0xff]
    %v134 = vld [vmem:[#allocation2 + $0xd0] sm:$0xff]
    %v135 = vld [vmem:[#allocation2 + $0xd8] sm:$0xff]
    %v136 = vld [vmem:[#allocation2 + $0xe0] sm:$0xff]
    %v137 = vld [vmem:[#allocation2 + $0xe8] sm:$0xff]
    %v138 = vld [vmem:[#allocation2 + $0xf0] sm:$0xff]
    %v139 = vld [vmem:[#allocation2 + $0xf8] sm:$0xff]
    %v140 = vld [vmem:[#allocation2 + $0x100] sm:$0xff]
    %v141 = vld [vmem:[#allocation2 + $0x108] sm:$0xff]
    %v142 = vld [vmem:[#allocation2 + $0x110] sm:$0xff]
    %v143 = vld [vmem:[#allocation2 + $0x118] sm:$0xff]
    %v144 = vld [vmem:[#allocation2 + $0x120] sm:$0xff]
    %v145 = vld [vmem:[#allocation2 + $0x128] sm:$0xff]
    %v146 = vld [vmem:[#allocation2 + $0x130] sm:$0xff]
    %v147 = vld [vmem:[#allocation2 + $0x138] sm:$0xff]
    %v148 = vld [vmem:[#allocation2 + $0x140] sm:$0xff]
    %v149 = vld [vmem:[#allocation2 + $0x148] sm:$0xff]
    %v150 = vld [vmem:[#allocation2 + $0x150] sm:$0xff]
    %v151 = vld [vmem:[#allocation2 + $0x158] sm:$0xff]
    %v152 = vld [vmem:[#allocation2 + $0x160] sm:$0xff]
    %v153 = vld [vmem:[#allocation2 + $0x168] sm:$0xff]
    %v154 = vld [vmem:[#allocation2 + $0x170] sm:$0xff]
    %v155 = vld [vmem:[#allocation2 + $0x178] sm:$0xff]
    %v156 = vld [vmem:[#allocation2 + $0x180] sm:$0xff]
    %v157 = vld [vmem:[#allocation2 + $0x188] sm:$0xff]
    %v158 = vld [vmem:[#allocation2 + $0x190] sm:$0xff]
    %v159 = vld [vmem:[#allocation2 + $0x198] sm:$0xff]
    %v160 = vld [vmem:[#allocation2 + $0x1a0] sm:$0xff]
    %v161 = vld [vmem:[#allocation2 + $0x1a8] sm:$0xff]
    %v162 = vld [vmem:[#allocation2 + $0x1b0] sm:$0xff]
    %v163 = vld [vmem:[#allocation2 + $0x1b8] sm:$0xff]
    %v164 = vld [vmem:[#allocation2 + $0x1c0] sm:$0xff]
    %v165 = vld [vmem:[#allocation2 + $0x1c8] sm:$0xff]
    %v166 = vld [vmem:[#allocation2 + $0x1d0] sm:$0xff]
    %v167 = vld [vmem:[#allocation2 + $0x1d8] sm:$0xff]
    %v168 = vld [vmem:[#allocation2 + $0x1e0] sm:$0xff]
    %v169 = vld [vmem:[#allocation2 + $0x1e8] sm:$0xff]
    %v170 = vld [vmem:[#allocation2 + $0x1f0] sm:$0xff]
    %v171 = vld [vmem:[#allocation2 + $0x1f8] sm:$0xff]
    %v172 = vld [vmem:[#allocation3] sm:$0xff]
    %v173 = vld [vmem:[#allocation3 + $0x8] sm:$0xff]
    %v174 = vld [vmem:[#allocation3 + $0x10] sm:$0xff]
    %v175 = vld [vmem:[#allocation3 + $0x18] sm:$0xff]
    %v176 = vld [vmem:[#allocation3 + $0x20] sm:$0xff]
    %v177 = vld [vmem:[#allocation3 + $0x28] sm:$0xff]
    %v178 = vld [vmem:[#allocation3 + $0x30] sm:$0xff]
    %v179 = vld [vmem:[#allocation3 + $0x38] sm:$0xff]
    %v180 = vld [vmem:[#allocation3 + $0x40] sm:$0xff]
    %v181 = vld [vmem:[#allocation3 + $0x48] sm:$0xff]
    %v182 = vld [vmem:[#allocation3 + $0x50] sm:$0xff]
    %v183 = vld [vmem:[#allocation3 + $0x58] sm:$0xff]
    %v184 = vld [vmem:[#allocation3 + $0x60] sm:$0xff]
    %v185 = vld [vmem:[#allocation3 + $0x68] sm:$0xff]
    %v186 = vld [vmem:[#allocation3 + $0x70] sm:$0xff]
    %v187 = vld [vmem:[#allocation3 + $0x78] sm:$0xff]
    %v188 = vld [vmem:[#allocation3 + $0x80] sm:$0xff]
    %v189 = vld [vmem:[#allocation3 + $0x88] sm:$0xff]
    %v190 = vld [vmem:[#allocation3 + $0x90] sm:$0xff]
    %v191 = vld [vmem:[#allocation3 + $0x98] sm:$0xff]
    %v192 = vld [vmem:[#allocation3 + $0xa0] sm:$0xff]
    %v193 = vld [vmem:[#allocation3 + $0xa8] sm:$0xff]
    %v194 = vld [vmem:[#allocation3 + $0xb0] sm:$0xff]
    %v195 = vld [vmem:[#allocation3 + $0xb8] sm:$0xff]
    %v196 = vld [vmem:[#allocation3 + $0xc0] sm:$0xff]
    %v197 = vld [vmem:[#allocation3 + $0xc8] sm:$0xff]
    %v198 = vld [vmem:[#allocation3 + $0xd0] sm:$0xff]
    %v199 = vld [vmem:[#allocation3 + $0xd8] sm:$0xff]
    %v200 = vld [vmem:[#allocation3 + $0xe0] sm:$0xff]
    %v201 = vld [vmem:[#allocation3 + $0xe8] sm:$0xff]
    %v202 = vld [vmem:[#allocation3 + $0xf0] sm:$0xff]
    %v203 = vld [vmem:[#allocation3 + $0xf8] sm:$0xff]
    %v204 = vld [vmem:[#allocation6] sm:$0xff]
    %v205 = vld [vmem:[#allocation6 + $0x8] sm:$0xff]
    %v206 = vld [vmem:[#allocation6 + $0x10] sm:$0xff]
    %v207 = vld [vmem:[#allocation6 + $0x18] sm:$0xff]
    %v208 = vld [vmem:[#allocation6 + $0x20] sm:$0xff]
    %v209 = vld [vmem:[#allocation6 + $0x28] sm:$0xff]
    %v210 = vld [vmem:[#allocation6 + $0x30] sm:$0xff]
    %v211 = vld [vmem:[#allocation6 + $0x38] sm:$0xff]
    %v212 = vld [vmem:[#allocation6 + $0x40] sm:$0xff]
    %v213 = vld [vmem:[#allocation6 + $0x48] sm:$0xff]
    %v214 = vld [vmem:[#allocation6 + $0x50] sm:$0xff]
    %v215 = vld [vmem:[#allocation6 + $0x58] sm:$0xff]
    %v216 = vld [vmem:[#allocation6 + $0x60] sm:$0xff]
    %v217 = vld [vmem:[#allocation6 + $0x68] sm:$0xff]
    %v218 = vld [vmem:[#allocation6 + $0x70] sm:$0xff]
    %v219 = vld [vmem:[#allocation6 + $0x78] sm:$0xff]
    %v220 = vld [vmem:[#allocation6 + $0x80] sm:$0xff]
    %v221 = vld [vmem:[#allocation6 + $0x88] sm:$0xff]
    %v222 = vld [vmem:[#allocation6 + $0x90] sm:$0xff]
    %v223 = vld [vmem:[#allocation6 + $0x98] sm:$0xff]
    %v224 = vld [vmem:[#allocation6 + $0xa0] sm:$0xff]
    %v225 = vld [vmem:[#allocation6 + $0xa8] sm:$0xff]
    %v226 = vld [vmem:[#allocation6 + $0xb0] sm:$0xff]
    %v227 = vld [vmem:[#allocation6 + $0xb8] sm:$0xff]
    %v228 = vld [vmem:[#allocation6 + $0xc0] sm:$0xff]
    %v229 = vld [vmem:[#allocation6 + $0xc8] sm:$0xff]
    %v230 = vld [vmem:[#allocation6 + $0xd0] sm:$0xff]
    %v231 = vld [vmem:[#allocation6 + $0xd8] sm:$0xff]
    %v232 = vld [vmem:[#allocation6 + $0xe0] sm:$0xff]
    %v233 = vld [vmem:[#allocation6 + $0xe8] sm:$0xff]
    %v234 = vld [vmem:[#allocation6 + $0xf0] sm:$0xff]
    %v235 = vld [vmem:[#allocation6 + $0xf8] sm:$0xff]
    %v236 = vld [vmem:[#allocation6 + $0x100] sm:$0xff]
    %v237 = vld [vmem:[#allocation6 + $0x108] sm:$0xff]
    %v238 = vld [vmem:[#allocation6 + $0x110] sm:$0xff]
    %v239 = vld [vmem:[#allocation6 + $0x118] sm:$0xff]
    %v240 = vld [vmem:[#allocation6 + $0x120] sm:$0xff]
    %v241 = vld [vmem:[#allocation6 + $0x128] sm:$0xff]
    %v242 = vld [vmem:[#allocation6 + $0x130] sm:$0xff]
    %v243 = vld [vmem:[#allocation6 + $0x138] sm:$0xff]
    %v244 = vld [vmem:[#allocation6 + $0x140] sm:$0xff]
    %v245 = vld [vmem:[#allocation6 + $0x148] sm:$0xff]
    %v246 = vld [vmem:[#allocation6 + $0x150] sm:$0xff]
    %v247 = vld [vmem:[#allocation6 + $0x158] sm:$0xff]
    %v248 = vld [vmem:[#allocation6 + $0x160] sm:$0xff]
    %v249 = vld [vmem:[#allocation6 + $0x168] sm:$0xff]
    %v250 = vld [vmem:[#allocation6 + $0x170] sm:$0xff]
    %v251 = vld [vmem:[#allocation6 + $0x178] sm:$0xff]
    %v252 = vld [vmem:[#allocation6 + $0x180] sm:$0xff]
    %v253 = vld [vmem:[#allocation6 + $0x188] sm:$0xff]
    %v254 = vld [vmem:[#allocation6 + $0x190] sm:$0xff]
    %v255 = vld [vmem:[#allocation6 + $0x198] sm:$0xff]
    %v256 = vld [vmem:[#allocation6 + $0x1a0] sm:$0xff]
    %v257 = vld [vmem:[#allocation6 + $0x1a8] sm:$0xff]
    %v258 = vld [vmem:[#allocation6 + $0x1b0] sm:$0xff]
    %v259 = vld [vmem:[#allocation6 + $0x1b8] sm:$0xff]
    %v260 = vld [vmem:[#allocation6 + $0x1c0] sm:$0xff]
    %v261 = vld [vmem:[#allocation6 + $0x1c8] sm:$0xff]
    %v262 = vld [vmem:[#allocation6 + $0x1d0] sm:$0xff]
    %v263 = vld [vmem:[#allocation6 + $0x1d8] sm:$0xff]
    %v264 = vld [vmem:[#allocation6 + $0x1e0] sm:$0xff]
    %v265 = vld [vmem:[#allocation6 + $0x1e8] sm:$0xff]
    %v266 = vld [vmem:[#allocation6 + $0x1f0] sm:$0xff]
    %v267 = vld [vmem:[#allocation6 + $0x1f8] sm:$0xff]
    %v268 = vld [vmem:[#allocation6 + $0x200] sm:$0xff]
    %v269 = vld [vmem:[#allocation6 + $0x208] sm:$0xff]
    %v270 = vld [vmem:[#allocation6 + $0x210] sm:$0xff]
    %v271 = vld [vmem:[#allocation6 + $0x218] sm:$0xff]
    %v272 = vld [vmem:[#allocation6 + $0x220] sm:$0xff]
    %v273 = vld [vmem:[#allocation6 + $0x228] sm:$0xff]
    %v274 = vld [vmem:[#allocation6 + $0x230] sm:$0xff]
    %v275 = vld [vmem:[#allocation6 + $0x238] sm:$0xff]
    %v276 = vld [vmem:[#allocation6 + $0x240] sm:$0xff]
    %v277 = vld [vmem:[#allocation6 + $0x248] sm:$0xff]
    %v278 = vld [vmem:[#allocation6 + $0x250] sm:$0xff]
    %v279 = vld [vmem:[#allocation6 + $0x258] sm:$0xff]
    %v280 = vld [vmem:[#allocation6 + $0x260] sm:$0xff]
    %v281 = vld [vmem:[#allocation6 + $0x268] sm:$0xff]
    %v282 = vld [vmem:[#allocation6 + $0x270] sm:$0xff]
    %v283 = vld [vmem:[#allocation6 + $0x278] sm:$0xff]
    %v284 = vld [vmem:[#allocation6 + $0x280] sm:$0xff]
    %v285 = vld [vmem:[#allocation6 + $0x288] sm:$0xff]
    %v286 = vld [vmem:[#allocation6 + $0x290] sm:$0xff]
    %v287 = vld [vmem:[#allocation6 + $0x298] sm:$0xff]
    %v288 = vld [vmem:[#allocation6 + $0x2a0] sm:$0xff]
    %v289 = vld [vmem:[#allocation6 + $0x2a8] sm:$0xff]
    %v290 = vld [vmem:[#allocation6 + $0x2b0] sm:$0xff]
    %v291 = vld [vmem:[#allocation6 + $0x2b8] sm:$0xff]
    %v292 = vld [vmem:[#allocation6 + $0x2c0] sm:$0xff]
    %v293 = vld [vmem:[#allocation6 + $0x2c8] sm:$0xff]
    %v294 = vld [vmem:[#allocation6 + $0x2d0] sm:$0xff]
    %v295 = vld [vmem:[#allocation6 + $0x2d8] sm:$0xff]
    %v296 = vld [vmem:[#allocation6 + $0x2e0] sm:$0xff]
    %v297 = vld [vmem:[#allocation6 + $0x2e8] sm:$0xff]
    %v298 = vld [vmem:[#allocation6 + $0x2f0] sm:$0xff]
    %v299 = vld [vmem:[#allocation6 + $0x2f8] sm:$0xff]
    %v300 = vld [vmem:[#allocation6 + $0x300] sm:$0xff]
    %v301 = vld [vmem:[#allocation6 + $0x308] sm:$0xff]
    %v302 = vld [vmem:[#allocation6 + $0x310] sm:$0xff]
    %v303 = vld [vmem:[#allocation6 + $0x318] sm:$0xff]
    %v304 = vld [vmem:[#allocation6 + $0x320] sm:$0xff]
    %v305 = vld [vmem:[#allocation6 + $0x328] sm:$0xff]
    %v306 = vld [vmem:[#allocation6 + $0x330] sm:$0xff]
    %v307 = vld [vmem:[#allocation6 + $0x338] sm:$0xff]
    %v308 = vld [vmem:[#allocation6 + $0x340] sm:$0xff]
    %v309 = vld [vmem:[#allocation6 + $0x348] sm:$0xff]
    %v310 = vld [vmem:[#allocation6 + $0x350] sm:$0xff]
    %v311 = vld [vmem:[#allocation6 + $0x358] sm:$0xff]
    %v312 = vld [vmem:[#allocation6 + $0x360] sm:$0xff]
    %v313 = vld [vmem:[#allocation6 + $0x368] sm:$0xff]
    %v314 = vld [vmem:[#allocation6 + $0x370] sm:$0xff]
    %v315 = vld [vmem:[#allocation6 + $0x378] sm:$0xff]
    %v316 = vld [vmem:[#allocation6 + $0x380] sm:$0xff]
    %v317 = vld [vmem:[#allocation6 + $0x388] sm:$0xff]
    %v318 = vld [vmem:[#allocation6 + $0x390] sm:$0xff]
    %v319 = vld [vmem:[#allocation6 + $0x398] sm:$0xff]
    %v320 = vld [vmem:[#allocation6 + $0x3a0] sm:$0xff]
    %v321 = vld [vmem:[#allocation6 + $0x3a8] sm:$0xff]
    %v322 = vld [vmem:[#allocation6 + $0x3b0] sm:$0xff]
    %v323 = vld [vmem:[#allocation6 + $0x3b8] sm:$0xff]
    %v324 = vld [vmem:[#allocation6 + $0x3c0] sm:$0xff]
    %v325 = vld [vmem:[#allocation6 + $0x3c8] sm:$0xff]
    %v326 = vld [vmem:[#allocation6 + $0x3d0] sm:$0xff]
    %v327 = vld [vmem:[#allocation6 + $0x3d8] sm:$0xff]
    %v328 = vld [vmem:[#allocation6 + $0x3e0] sm:$0xff]
    %v329 = vld [vmem:[#allocation6 + $0x3e8] sm:$0xff]
    %v330 = vld [vmem:[#allocation6 + $0x3f0] sm:$0xff]
    %v331 = vld [vmem:[#allocation6 + $0x3f8] sm:$0xff]
    %v364 = vunpack.c.l.b16 %v172
    %v365 = vunpack.c.h.b16 %v172
    %v366 = vunpack.c.l.b16 %v173
    %v367 = vunpack.c.h.b16 %v173
    %v368 = vunpack.c.l.b16 %v174
    %v369 = vunpack.c.h.b16 %v174
    %v370 = vunpack.c.l.b16 %v175
    %v371 = vunpack.c.h.b16 %v175
    %v372 = vunpack.c.l.b16 %v176
    %v373 = vunpack.c.h.b16 %v176
    %v374 = vunpack.c.l.b16 %v177
    %v375 = vunpack.c.h.b16 %v177
    %v376 = vunpack.c.l.b16 %v178
    %v377 = vunpack.c.h.b16 %v178
    %v378 = vunpack.c.l.b16 %v179
    %v379 = vunpack.c.h.b16 %v179
    %v380 = vunpack.c.l.b16 %v180
    %v381 = vunpack.c.h.b16 %v180
    %v382 = vunpack.c.l.b16 %v181
    %v383 = vunpack.c.h.b16 %v181
    %v384 = vunpack.c.l.b16 %v182
    %v385 = vunpack.c.h.b16 %v182
    %v386 = vunpack.c.l.b16 %v183
    %v387 = vunpack.c.h.b16 %v183
    %v388 = vunpack.c.l.b16 %v184
    %v389 = vunpack.c.h.b16 %v184
    %v390 = vunpack.c.l.b16 %v185
    %v391 = vunpack.c.h.b16 %v185
    %v392 = vunpack.c.l.b16 %v186
    %v393 = vunpack.c.h.b16 %v186
    %v394 = vunpack.c.l.b16 %v187
    %v395 = vunpack.c.h.b16 %v187
    %v396 = vunpack.c.l.b16 %v188
    %v397 = vunpack.c.h.b16 %v188
    %v398 = vunpack.c.l.b16 %v189
    %v399 = vunpack.c.h.b16 %v189
    %v400 = vunpack.c.l.b16 %v190
    %v401 = vunpack.c.h.b16 %v190
    %v402 = vunpack.c.l.b16 %v191
    %v403 = vunpack.c.h.b16 %v191
    %v404 = vunpack.c.l.b16 %v192
    %v405 = vunpack.c.h.b16 %v192
    %v406 = vunpack.c.l.b16 %v193
    %v407 = vunpack.c.h.b16 %v193
    %v408 = vunpack.c.l.b16 %v194
    %v409 = vunpack.c.h.b16 %v194
    %v410 = vunpack.c.l.b16 %v195
    %v411 = vunpack.c.h.b16 %v195
    %v412 = vunpack.c.l.b16 %v196
    %v413 = vunpack.c.h.b16 %v196
    %v414 = vunpack.c.l.b16 %v197
    %v415 = vunpack.c.h.b16 %v197
    %v416 = vunpack.c.l.b16 %v198
    %v417 = vunpack.c.h.b16 %v198
    %v418 = vunpack.c.l.b16 %v199
    %v419 = vunpack.c.h.b16 %v199
    %v420 = vunpack.c.l.b16 %v200
    %v421 = vunpack.c.h.b16 %v200
    %v422 = vunpack.c.l.b16 %v201
    %v423 = vunpack.c.h.b16 %v201
    %v424 = vunpack.c.l.b16 %v202
    %v425 = vunpack.c.h.b16 %v202
    %v426 = vunpack.c.l.b16 %v203
    %v427 = vunpack.c.h.b16 %v203
    %v428 = vpack.c.b16 %v368, %v364
    %v429 = vpack.c.b16 %v369, %v365
    %v430 = vpack.c.b16 %v370, %v366
    %v431 = vpack.c.b16 %v371, %v367
    %v432 = vpack.c.b16 %v376, %v372
    %v433 = vpack.c.b16 %v377, %v373
    %v434 = vpack.c.b16 %v378, %v374
    %v435 = vpack.c.b16 %v379, %v375
    %v436 = vpack.c.b16 %v384, %v380
    %v437 = vpack.c.b16 %v385, %v381
    %v438 = vpack.c.b16 %v386, %v382
    %v439 = vpack.c.b16 %v387, %v383
    %v440 = vpack.c.b16 %v392, %v388
    %v441 = vpack.c.b16 %v393, %v389
    %v442 = vpack.c.b16 %v394, %v390
    %v443 = vpack.c.b16 %v395, %v391
    %v444 = vpack.c.b16 %v400, %v396
    %v445 = vpack.c.b16 %v401, %v397
    %v446 = vpack.c.b16 %v402, %v398
    %v447 = vpack.c.b16 %v403, %v399
    %v448 = vpack.c.b16 %v408, %v404
    %v449 = vpack.c.b16 %v409, %v405
    %v450 = vpack.c.b16 %v410, %v406
    %v451 = vpack.c.b16 %v411, %v407
    %v452 = vpack.c.b16 %v416, %v412
    %v453 = vpack.c.b16 %v417, %v413
    %v454 = vpack.c.b16 %v418, %v414
    %v455 = vpack.c.b16 %v419, %v415
    %v456 = vpack.c.b16 %v424, %v420
    %v457 = vpack.c.b16 %v425, %v421
    %v458 = vpack.c.b16 %v426, %v422
    %v459 = vpack.c.b16 %v427, %v423
    %v620 = vunpack.c.l.b16 %v204
    %v621 = vunpack.c.h.b16 %v204
    %v622 = vunpack.c.l.b16 %v205
    %v623 = vunpack.c.h.b16 %v205
    %v624 = vunpack.c.l.b16 %v206
    %v625 = vunpack.c.h.b16 %v206
    %v626 = vunpack.c.l.b16 %v207
    %v627 = vunpack.c.h.b16 %v207
    %v628 = vunpack.c.l.b16 %v208
    %v629 = vunpack.c.h.b16 %v208
    %v630 = vunpack.c.l.b16 %v209
    %v631 = vunpack.c.h.b16 %v209
    %v632 = vunpack.c.l.b16 %v210
    %v633 = vunpack.c.h.b16 %v210
    %v634 = vunpack.c.l.b16 %v211
    %v635 = vunpack.c.h.b16 %v211
    %v636 = vunpack.c.l.b16 %v212
    %v637 = vunpack.c.h.b16 %v212
    %v638 = vunpack.c.l.b16 %v213
    %v639 = vunpack.c.h.b16 %v213
    %v640 = vunpack.c.l.b16 %v214
    %v641 = vunpack.c.h.b16 %v214
    %v642 = vunpack.c.l.b16 %v215
    %v643 = vunpack.c.h.b16 %v215
    %v644 = vunpack.c.l.b16 %v216
    %v645 = vunpack.c.h.b16 %v216
    %v646 = vunpack.c.l.b16 %v217
    %v647 = vunpack.c.h.b16 %v217
    %v648 = vunpack.c.l.b16 %v218
    %v649 = vunpack.c.h.b16 %v218
    %v650 = vunpack.c.l.b16 %v219
    %v651 = vunpack.c.h.b16 %v219
    %v652 = vunpack.c.l.b16 %v220
    %v653 = vunpack.c.h.b16 %v220
    %v654 = vunpack.c.l.b16 %v221
    %v655 = vunpack.c.h.b16 %v221
    %v656 = vunpack.c.l.b16 %v222
    %v657 = vunpack.c.h.b16 %v222
    %v658 = vunpack.c.l.b16 %v223
    %v659 = vunpack.c.h.b16 %v223
    %v660 = vunpack.c.l.b16 %v224
    %v661 = vunpack.c.h.b16 %v224
    %v662 = vunpack.c.l.b16 %v225
    %v663 = vunpack.c.h.b16 %v225
    %v664 = vunpack.c.l.b16 %v226
    %v665 = vunpack.c.h.b16 %v226
    %v666 = vunpack.c.l.b16 %v227
    %v667 = vunpack.c.h.b16 %v227
    %v668 = vunpack.c.l.b16 %v228
    %v669 = vunpack.c.h.b16 %v228
    %v670 = vunpack.c.l.b16 %v229
    %v671 = vunpack.c.h.b16 %v229
    %v672 = vunpack.c.l.b16 %v230
    %v673 = vunpack.c.h.b16 %v230
    %v674 = vunpack.c.l.b16 %v231
    %v675 = vunpack.c.h.b16 %v231
    %v676 = vunpack.c.l.b16 %v232
    %v677 = vunpack.c.h.b16 %v232
    %v678 = vunpack.c.l.b16 %v233
    %v679 = vunpack.c.h.b16 %v233
    %v680 = vunpack.c.l.b16 %v234
    %v681 = vunpack.c.h.b16 %v234
    %v682 = vunpack.c.l.b16 %v235
    %v683 = vunpack.c.h.b16 %v235
    %v684 = vunpack.c.l.b16 %v236
    %v685 = vunpack.c.h.b16 %v236
    %v686 = vunpack.c.l.b16 %v237
    %v687 = vunpack.c.h.b16 %v237
    %v688 = vunpack.c.l.b16 %v238
    %v689 = vunpack.c.h.b16 %v238
    %v690 = vunpack.c.l.b16 %v239
    %v691 = vunpack.c.h.b16 %v239
    %v692 = vunpack.c.l.b16 %v240
    %v693 = vunpack.c.h.b16 %v240
    %v694 = vunpack.c.l.b16 %v241
    %v695 = vunpack.c.h.b16 %v241
    %v696 = vunpack.c.l.b16 %v242
    %v697 = vunpack.c.h.b16 %v242
    %v698 = vunpack.c.l.b16 %v243
    %v699 = vunpack.c.h.b16 %v243
    %v700 = vunpack.c.l.b16 %v244
    %v701 = vunpack.c.h.b16 %v244
    %v702 = vunpack.c.l.b16 %v245
    %v703 = vunpack.c.h.b16 %v245
    %v704 = vunpack.c.l.b16 %v246
    %v705 = vunpack.c.h.b16 %v246
    %v706 = vunpack.c.l.b16 %v247
    %v707 = vunpack.c.h.b16 %v247
    %v708 = vunpack.c.l.b16 %v248
    %v709 = vunpack.c.h.b16 %v248
    %v710 = vunpack.c.l.b16 %v249
    %v711 = vunpack.c.h.b16 %v249
    %v712 = vunpack.c.l.b16 %v250
    %v713 = vunpack.c.h.b16 %v250
    %v714 = vunpack.c.l.b16 %v251
    %v715 = vunpack.c.h.b16 %v251
    %v716 = vunpack.c.l.b16 %v252
    %v717 = vunpack.c.h.b16 %v252
    %v718 = vunpack.c.l.b16 %v253
    %v719 = vunpack.c.h.b16 %v253
    %v720 = vunpack.c.l.b16 %v254
    %v721 = vunpack.c.h.b16 %v254
    %v722 = vunpack.c.l.b16 %v255
    %v723 = vunpack.c.h.b16 %v255
    %v724 = vunpack.c.l.b16 %v256
    %v725 = vunpack.c.h.b16 %v256
    %v726 = vunpack.c.l.b16 %v257
    %v727 = vunpack.c.h.b16 %v257
    %v728 = vunpack.c.l.b16 %v258
    %v729 = vunpack.c.h.b16 %v258
    %v730 = vunpack.c.l.b16 %v259
    %v731 = vunpack.c.h.b16 %v259
    %v732 = vunpack.c.l.b16 %v260
    %v733 = vunpack.c.h.b16 %v260
    %v734 = vunpack.c.l.b16 %v261
    %v735 = vunpack.c.h.b16 %v261
    %v736 = vunpack.c.l.b16 %v262
    %v737 = vunpack.c.h.b16 %v262
    %v738 = vunpack.c.l.b16 %v263
    %v739 = vunpack.c.h.b16 %v263
    %v740 = vunpack.c.l.b16 %v264
    %v741 = vunpack.c.h.b16 %v264
    %v742 = vunpack.c.l.b16 %v265
    %v743 = vunpack.c.h.b16 %v265
    %v744 = vunpack.c.l.b16 %v266
    %v745 = vunpack.c.h.b16 %v266
    %v746 = vunpack.c.l.b16 %v267
    %v747 = vunpack.c.h.b16 %v267
    %v748 = vunpack.c.l.b16 %v268
    %v749 = vunpack.c.h.b16 %v268
    %v750 = vunpack.c.l.b16 %v269
    %v751 = vunpack.c.h.b16 %v269
    %v752 = vunpack.c.l.b16 %v270
    %v753 = vunpack.c.h.b16 %v270
    %v754 = vunpack.c.l.b16 %v271
    %v755 = vunpack.c.h.b16 %v271
    %v756 = vunpack.c.l.b16 %v272
    %v757 = vunpack.c.h.b16 %v272
    %v758 = vunpack.c.l.b16 %v273
    %v759 = vunpack.c.h.b16 %v273
    %v760 = vunpack.c.l.b16 %v274
    %v761 = vunpack.c.h.b16 %v274
    %v762 = vunpack.c.l.b16 %v275
    %v763 = vunpack.c.h.b16 %v275
    %v764 = vunpack.c.l.b16 %v276
    %v765 = vunpack.c.h.b16 %v276
    %v766 = vunpack.c.l.b16 %v277
    %v767 = vunpack.c.h.b16 %v277
    %v768 = vunpack.c.l.b16 %v278
    %v769 = vunpack.c.h.b16 %v278
    %v770 = vunpack.c.l.b16 %v279
    %v771 = vunpack.c.h.b16 %v279
    %v772 = vunpack.c.l.b16 %v280
    %v773 = vunpack.c.h.b16 %v280
    %v774 = vunpack.c.l.b16 %v281
    %v775 = vunpack.c.h.b16 %v281
    %v776 = vunpack.c.l.b16 %v282
    %v777 = vunpack.c.h.b16 %v282
    %v778 = vunpack.c.l.b16 %v283
    %v779 = vunpack.c.h.b16 %v283
    %v780 = vunpack.c.l.b16 %v284
    %v781 = vunpack.c.h.b16 %v284
    %v782 = vunpack.c.l.b16 %v285
    %v783 = vunpack.c.h.b16 %v285
    %v784 = vunpack.c.l.b16 %v286
    %v785 = vunpack.c.h.b16 %v286
    %v786 = vunpack.c.l.b16 %v287
    %v787 = vunpack.c.h.b16 %v287
    %v788 = vunpack.c.l.b16 %v288
    %v789 = vunpack.c.h.b16 %v288
    %v790 = vunpack.c.l.b16 %v289
    %v791 = vunpack.c.h.b16 %v289
    %v792 = vunpack.c.l.b16 %v290
    %v793 = vunpack.c.h.b16 %v290
    %v794 = vunpack.c.l.b16 %v291
    %v795 = vunpack.c.h.b16 %v291
    %v796 = vunpack.c.l.b16 %v292
    %v797 = vunpack.c.h.b16 %v292
    %v798 = vunpack.c.l.b16 %v293
    %v799 = vunpack.c.h.b16 %v293
    %v800 = vunpack.c.l.b16 %v294
    %v801 = vunpack.c.h.b16 %v294
    %v802 = vunpack.c.l.b16 %v295
    %v803 = vunpack.c.h.b16 %v295
    %v804 = vunpack.c.l.b16 %v296
    %v805 = vunpack.c.h.b16 %v296
    %v806 = vunpack.c.l.b16 %v297
    %v807 = vunpack.c.h.b16 %v297
    %v808 = vunpack.c.l.b16 %v298
    %v809 = vunpack.c.h.b16 %v298
    %v810 = vunpack.c.l.b16 %v299
    %v811 = vunpack.c.h.b16 %v299
    %v812 = vunpack.c.l.b16 %v300
    %v813 = vunpack.c.h.b16 %v300
    %v814 = vunpack.c.l.b16 %v301
    %v815 = vunpack.c.h.b16 %v301
    %v816 = vunpack.c.l.b16 %v302
    %v817 = vunpack.c.h.b16 %v302
    %v818 = vunpack.c.l.b16 %v303
    %v819 = vunpack.c.h.b16 %v303
    %v820 = vunpack.c.l.b16 %v304
    %v821 = vunpack.c.h.b16 %v304
    %v822 = vunpack.c.l.b16 %v305
    %v823 = vunpack.c.h.b16 %v305
    %v824 = vunpack.c.l.b16 %v306
    %v825 = vunpack.c.h.b16 %v306
    %v826 = vunpack.c.l.b16 %v307
    %v827 = vunpack.c.h.b16 %v307
    %v828 = vunpack.c.l.b16 %v308
    %v829 = vunpack.c.h.b16 %v308
    %v830 = vunpack.c.l.b16 %v309
    %v831 = vunpack.c.h.b16 %v309
    %v832 = vunpack.c.l.b16 %v310
    %v833 = vunpack.c.h.b16 %v310
    %v834 = vunpack.c.l.b16 %v311
    %v835 = vunpack.c.h.b16 %v311
    %v836 = vunpack.c.l.b16 %v312
    %v837 = vunpack.c.h.b16 %v312
    %v838 = vunpack.c.l.b16 %v313
    %v839 = vunpack.c.h.b16 %v313
    %v840 = vunpack.c.l.b16 %v314
    %v841 = vunpack.c.h.b16 %v314
    %v842 = vunpack.c.l.b16 %v315
    %v843 = vunpack.c.h.b16 %v315
    %v844 = vunpack.c.l.b16 %v316
    %v845 = vunpack.c.h.b16 %v316
    %v846 = vunpack.c.l.b16 %v317
    %v847 = vunpack.c.h.b16 %v317
    %v848 = vunpack.c.l.b16 %v318
    %v849 = vunpack.c.h.b16 %v318
    %v850 = vunpack.c.l.b16 %v319
    %v851 = vunpack.c.h.b16 %v319
    %v852 = vunpack.c.l.b16 %v320
    %v853 = vunpack.c.h.b16 %v320
    %v854 = vunpack.c.l.b16 %v321
    %v855 = vunpack.c.h.b16 %v321
    %v856 = vunpack.c.l.b16 %v322
    %v857 = vunpack.c.h.b16 %v322
    %v858 = vunpack.c.l.b16 %v323
    %v859 = vunpack.c.h.b16 %v323
    %v860 = vunpack.c.l.b16 %v324
    %v861 = vunpack.c.h.b16 %v324
    %v862 = vunpack.c.l.b16 %v325
    %v863 = vunpack.c.h.b16 %v325
    %v864 = vunpack.c.l.b16 %v326
    %v865 = vunpack.c.h.b16 %v326
    %v866 = vunpack.c.l.b16 %v327
    %v867 = vunpack.c.h.b16 %v327
    %v868 = vunpack.c.l.b16 %v328
    %v869 = vunpack.c.h.b16 %v328
    %v870 = vunpack.c.l.b16 %v329
    %v871 = vunpack.c.h.b16 %v329
    %v872 = vunpack.c.l.b16 %v330
    %v873 = vunpack.c.h.b16 %v330
    %v874 = vunpack.c.l.b16 %v331
    %v875 = vunpack.c.h.b16 %v331
    %v876 = vpack.c.b16 %v624, %v620
    %v877 = vpack.c.b16 %v625, %v621
    %v878 = vpack.c.b16 %v626, %v622
    %v879 = vpack.c.b16 %v627, %v623
    %v880 = vpack.c.b16 %v632, %v628
    %v881 = vpack.c.b16 %v633, %v629
    %v882 = vpack.c.b16 %v634, %v630
    %v883 = vpack.c.b16 %v635, %v631
    %v884 = vpack.c.b16 %v640, %v636
    %v885 = vpack.c.b16 %v641, %v637
    %v886 = vpack.c.b16 %v642, %v638
    %v887 = vpack.c.b16 %v643, %v639
    %v888 = vpack.c.b16 %v648, %v644
    %v889 = vpack.c.b16 %v649, %v645
    %v890 = vpack.c.b16 %v650, %v646
    %v891 = vpack.c.b16 %v651, %v647
    %v892 = vpack.c.b16 %v656, %v652
    %v893 = vpack.c.b16 %v657, %v653
    %v894 = vpack.c.b16 %v658, %v654
    %v895 = vpack.c.b16 %v659, %v655
    %v896 = vpack.c.b16 %v664, %v660
    %v897 = vpack.c.b16 %v665, %v661
    %v898 = vpack.c.b16 %v666, %v662
    %v899 = vpack.c.b16 %v667, %v663
    %v900 = vpack.c.b16 %v672, %v668
    %v901 = vpack.c.b16 %v673, %v669
    %v902 = vpack.c.b16 %v674, %v670
    %v903 = vpack.c.b16 %v675, %v671
    %v904 = vpack.c.b16 %v680, %v676
    %v905 = vpack.c.b16 %v681, %v677
    %v906 = vpack.c.b16 %v682, %v678
    %v907 = vpack.c.b16 %v683, %v679
    %v908 = vpack.c.b16 %v688, %v684
    %v909 = vpack.c.b16 %v689, %v685
    %v910 = vpack.c.b16 %v690, %v686
    %v911 = vpack.c.b16 %v691, %v687
    %v912 = vpack.c.b16 %v696, %v692
    %v913 = vpack.c.b16 %v697, %v693
    %v914 = vpack.c.b16 %v698, %v694
    %v915 = vpack.c.b16 %v699, %v695
    %v916 = vpack.c.b16 %v704, %v700
    %v917 = vpack.c.b16 %v705, %v701
    %v918 = vpack.c.b16 %v706, %v702
    %v919 = vpack.c.b16 %v707, %v703
    %v920 = vpack.c.b16 %v712, %v708
    %v921 = vpack.c.b16 %v713, %v709
    %v922 = vpack.c.b16 %v714, %v710
    %v923 = vpack.c.b16 %v715, %v711
    %v924 = vpack.c.b16 %v720, %v716
    %v925 = vpack.c.b16 %v721, %v717
    %v926 = vpack.c.b16 %v722, %v718
    %v927 = vpack.c.b16 %v723, %v719
    %v928 = vpack.c.b16 %v728, %v724
    %v929 = vpack.c.b16 %v729, %v725
    %v930 = vpack.c.b16 %v730, %v726
    %v931 = vpack.c.b16 %v731, %v727
    %v932 = vpack.c.b16 %v736, %v732
    %v933 = vpack.c.b16 %v737, %v733
    %v934 = vpack.c.b16 %v738, %v734
    %v935 = vpack.c.b16 %v739, %v735
    %v936 = vpack.c.b16 %v744, %v740
    %v937 = vpack.c.b16 %v745, %v741
    %v938 = vpack.c.b16 %v746, %v742
    %v939 = vpack.c.b16 %v747, %v743
    %v940 = vpack.c.b16 %v752, %v748
    %v941 = vpack.c.b16 %v753, %v749
    %v942 = vpack.c.b16 %v754, %v750
    %v943 = vpack.c.b16 %v755, %v751
    %v944 = vpack.c.b16 %v760, %v756
    %v945 = vpack.c.b16 %v761, %v757
    %v946 = vpack.c.b16 %v762, %v758
    %v947 = vpack.c.b16 %v763, %v759
    %v948 = vpack.c.b16 %v768, %v764
    %v949 = vpack.c.b16 %v769, %v765
    %v950 = vpack.c.b16 %v770, %v766
    %v951 = vpack.c.b16 %v771, %v767
    %v952 = vpack.c.b16 %v776, %v772
    %v953 = vpack.c.b16 %v777, %v773
    %v954 = vpack.c.b16 %v778, %v774
    %v955 = vpack.c.b16 %v779, %v775
    %v956 = vpack.c.b16 %v784, %v780
    %v957 = vpack.c.b16 %v785, %v781
    %v958 = vpack.c.b16 %v786, %v782
    %v959 = vpack.c.b16 %v787, %v783
    %v960 = vpack.c.b16 %v792, %v788
    %v961 = vpack.c.b16 %v793, %v789
    %v962 = vpack.c.b16 %v794, %v790
    %v963 = vpack.c.b16 %v795, %v791
    %v964 = vpack.c.b16 %v800, %v796
    %v965 = vpack.c.b16 %v801, %v797
    %v966 = vpack.c.b16 %v802, %v798
    %v967 = vpack.c.b16 %v803, %v799
    %v968 = vpack.c.b16 %v808, %v804
    %v969 = vpack.c.b16 %v809, %v805
    %v970 = vpack.c.b16 %v810, %v806
    %v971 = vpack.c.b16 %v811, %v807
    %v972 = vpack.c.b16 %v816, %v812
    %v973 = vpack.c.b16 %v817, %v813
    %v974 = vpack.c.b16 %v818, %v814
    %v975 = vpack.c.b16 %v819, %v815
    %v976 = vpack.c.b16 %v824, %v820
    %v977 = vpack.c.b16 %v825, %v821
    %v978 = vpack.c.b16 %v826, %v822
    %v979 = vpack.c.b16 %v827, %v823
    %v980 = vpack.c.b16 %v832, %v828
    %v981 = vpack.c.b16 %v833, %v829
    %v982 = vpack.c.b16 %v834, %v830
    %v983 = vpack.c.b16 %v835, %v831
    %v984 = vpack.c.b16 %v840, %v836
    %v985 = vpack.c.b16 %v841, %v837
    %v986 = vpack.c.b16 %v842, %v838
    %v987 = vpack.c.b16 %v843, %v839
    %v988 = vpack.c.b16 %v848, %v844
    %v989 = vpack.c.b16 %v849, %v845
    %v990 = vpack.c.b16 %v850, %v846
    %v991 = vpack.c.b16 %v851, %v847
    %v992 = vpack.c.b16 %v856, %v852
    %v993 = vpack.c.b16 %v857, %v853
    %v994 = vpack.c.b16 %v858, %v854
    %v995 = vpack.c.b16 %v859, %v855
    %v996 = vpack.c.b16 %v864, %v860
    %v997 = vpack.c.b16 %v865, %v861
    %v998 = vpack.c.b16 %v866, %v862
    %v999 = vpack.c.b16 %v867, %v863
    %v1000 = vpack.c.b16 %v872, %v868
    %v1001 = vpack.c.b16 %v873, %v869
    %v1002 = vpack.c.b16 %v874, %v870
    %v1003 = vpack.c.b16 %v875, %v871
    %1132 = vmatprep.subr.bf16.mxu0 %v877
    %1133 = vmatpush1.bf16.msra.mxu0 %v876
    %1134 = vmatprep.subr.bf16.mxu0 %v881
    %1135 = vmatpush1.bf16.msra.mxu0 %v880
    %1136 = vmatprep.subr.bf16.mxu0 %v885
    %1137 = vmatpush1.bf16.msra.mxu0 %v884
    %1138 = vmatprep.subr.bf16.mxu0 %v889
    %1139 = vmatpush1.bf16.msra.mxu0 %v888
    %1140 = vmatprep.subr.bf16.mxu0 %v893
    %1141 = vmatpush1.bf16.msra.mxu0 %v892
    %1142 = vmatprep.subr.bf16.mxu0 %v897
    %1143 = vmatpush1.bf16.msra.mxu0 %v896
    %1144 = vmatprep.subr.bf16.mxu0 %v901
    %1145 = vmatpush1.bf16.msra.mxu0 %v900
    %1146 = vmatprep.subr.bf16.mxu0 %v905
    %1147 = vmatpush1.bf16.msra.mxu0 %v904
    %1148 = vmatprep.subr.bf16.mxu0 %v909
    %1149 = vmatpush1.bf16.msra.mxu0 %v908
    %1150 = vmatprep.subr.bf16.mxu0 %v913
    %1151 = vmatpush1.bf16.msra.mxu0 %v912
    %1152 = vmatprep.subr.bf16.mxu0 %v917
    %1153 = vmatpush1.bf16.msra.mxu0 %v916
    %1154 = vmatprep.subr.bf16.mxu0 %v921
    %1155 = vmatpush1.bf16.msra.mxu0 %v920
    %1156 = vmatprep.subr.bf16.mxu0 %v925
    %1157 = vmatpush1.bf16.msra.mxu0 %v924
    %1158 = vmatprep.subr.bf16.mxu0 %v929
    %1159 = vmatpush1.bf16.msra.mxu0 %v928
    %1160 = vmatprep.subr.bf16.mxu0 %v933
    %1161 = vmatpush1.bf16.msra.mxu0 %v932
    %1162 = vmatprep.subr.bf16.mxu0 %v937
    %1163 = vmatpush1.bf16.msra.mxu0 %v936
    %1164 = vmatprep.mubr.bf16.mxu0 %v429
    %1165 = vmatmul.mubr.bf16.gmra.mrb[0].mxu0 %v428
    %v1166 = vpop.f32.mrb[0].mxu0
    %v1167 = vadd.f32 0.0, %v1166
    %v1168 = vpop.f32.mrb[0].mxu0
    %v1169 = vadd.f32 0.0, %v1168
    %v1170 = vpop.f32.mrb[0].mxu0
    %v1171 = vadd.f32 0.0, %v1170
    %v1172 = vpop.f32.mrb[0].mxu0
    %v1173 = vadd.f32 0.0, %v1172
    %1174 = vmatprep.mubr.bf16.mxu0 %v433
    %1175 = vmatmul.mubr.bf16.gmra.mrb[0].mxu0 %v432
    %v1176 = vpop.f32.mrb[0].mxu0
    %v1177 = vadd.f32 0.0, %v1176
    %v1178 = vpop.f32.mrb[0].mxu0
    %v1179 = vadd.f32 0.0, %v1178
    %v1180 = vpop.f32.mrb[0].mxu0
    %v1181 = vadd.f32 0.0, %v1180
    %v1182 = vpop.f32.mrb[0].mxu0
    %v1183 = vadd.f32 0.0, %v1182
    %1184 = vmatprep.mubr.bf16.mxu0 %v437
    %1185 = vmatmul.mubr.bf16.gmra.mrb[0].mxu0 %v436
    %v1186 = vpop.f32.mrb[0].mxu0
    %v1187 = vadd.f32 0.0, %v1186
    %v1188 = vpop.f32.mrb[0].mxu0
    %v1189 = vadd.f32 0.0, %v1188
    %v1190 = vpop.f32.mrb[0].mxu0
    %v1191 = vadd.f32 0.0, %v1190
    %v1192 = vpop.f32.mrb[0].mxu0
    %v1193 = vadd.f32 0.0, %v1192
    %1194 = vmatprep.mubr.bf16.mxu0 %v441
    %1195 = vmatmul.mubr.bf16.gmra.mrb[0].mxu0 %v440
    %v1196 = vpop.f32.mrb[0].mxu0
    %v1197 = vadd.f32 0.0, %v1196
    %v1198 = vpop.f32.mrb[0].mxu0
    %v1199 = vadd.f32 0.0, %v1198
    %v1200 = vpop.f32.mrb[0].mxu0
    %v1201 = vadd.f32 0.0, %v1200
    %v1202 = vpop.f32.mrb[0].mxu0
    %v1203 = vadd.f32 0.0, %v1202
    %1204 = vmatprep.mubr.bf16.mxu0 %v445
    %1205 = vmatmul.mubr.bf16.gmra.mrb[0].mxu0 %v444
    %v1206 = vpop.f32.mrb[0].mxu0
    %v1207 = vadd.f32 0.0, %v1206
    %v1208 = vpop.f32.mrb[0].mxu0
    %v1209 = vadd.f32 0.0, %v1208
    %v1210 = vpop.f32.mrb[0].mxu0
    %v1211 = vadd.f32 0.0, %v1210
    %v1212 = vpop.f32.mrb[0].mxu0
    %v1213 = vadd.f32 0.0, %v1212
    %1214 = vmatprep.mubr.bf16.mxu0 %v449
    %1215 = vmatmul.mubr.bf16.gmra.mrb[0].mxu0 %v448
    %v1216 = vpop.f32.mrb[0].mxu0
    %v1217 = vadd.f32 0.0, %v1216
    %v1218 = vpop.f32.mrb[0].mxu0
    %v1219 = vadd.f32 0.0, %v1218
    %v1220 = vpop.f32.mrb[0].mxu0
    %v1221 = vadd.f32 0.0, %v1220
    %v1222 = vpop.f32.mrb[0].mxu0
    %v1223 = vadd.f32 0.0, %v1222
    %1224 = vmatprep.mubr.bf16.mxu0 %v453
    %1225 = vmatmul.mubr.bf16.gmra.mrb[0].mxu0 %v452
    %v1226 = vpop.f32.mrb[0].mxu0
    %v1227 = vadd.f32 0.0, %v1226
    %v1228 = vpop.f32.mrb[0].mxu0
    %v1229 = vadd.f32 0.0, %v1228
    %v1230 = vpop.f32.mrb[0].mxu0
    %v1231 = vadd.f32 0.0, %v1230
    %v1232 = vpop.f32.mrb[0].mxu0
    %v1233 = vadd.f32 0.0, %v1232
    %1234 = vmatprep.mubr.bf16.mxu0 %v457
    %1235 = vmatmul.mubr.bf16.gmra.mrb[0].mxu0 %v456
    %v1236 = vpop.f32.mrb[0].mxu0
    %v1237 = vadd.f32 0.0, %v1236
    %v1238 = vpop.f32.mrb[0].mxu0
    %v1239 = vadd.f32 0.0, %v1238
    %v1240 = vpop.f32.mrb[0].mxu0
    %v1241 = vadd.f32 0.0, %v1240
    %v1242 = vpop.f32.mrb[0].mxu0
    %v1243 = vadd.f32 0.0, %v1242
    %1244 = vdwg.mxu0
    %1245 = vmatprep.subr.bf16.mxu0 %v941
    %1246 = vmatpush1.bf16.msra.mxu0 %v940
    %1247 = vmatprep.subr.bf16.mxu0 %v945
    %1248 = vmatpush1.bf16.msra.mxu0 %v944
    %1249 = vmatprep.subr.bf16.mxu0 %v949
    %1250 = vmatpush1.bf16.msra.mxu0 %v948
    %1251 = vmatprep.subr.bf16.mxu0 %v953
    %1252 = vmatpush1.bf16.msra.mxu0 %v952
    %1253 = vmatprep.subr.bf16.mxu0 %v957
    %1254 = vmatpush1.bf16.msra.mxu0 %v956
    %1255 = vmatprep.subr.bf16.mxu0 %v961
    %1256 = vmatpush1.bf16.msra.mxu0 %v960
    %1257 = vmatprep.subr.bf16.mxu0 %v965
    %1258 = vmatpush1.bf16.msra.mxu0 %v964
    %1259 = vmatprep.subr.bf16.mxu0 %v969
    %1260 = vmatpush1.bf16.msra.mxu0 %v968
    %1261 = vmatprep.subr.bf16.mxu0 %v973
    %1262 = vmatpush1.bf16.msra.mxu0 %v972
    %1263 = vmatprep.subr.bf16.mxu0 %v977
    %1264 = vmatpush1.bf16.msra.mxu0 %v976
    %1265 = vmatprep.subr.bf16.mxu0 %v981
    %1266 = vmatpush1.bf16.msra.mxu0 %v980
    %1267 = vmatprep.subr.bf16.mxu0 %v985
    %1268 = vmatpush1.bf16.msra.mxu0 %v984
    %1269 = vmatprep.subr.bf16.mxu0 %v989
    %1270 = vmatpush1.bf16.msra.mxu0 %v988
    %1271 = vmatprep.subr.bf16.mxu0 %v993
    %1272 = vmatpush1.bf16.msra.mxu0 %v992
    %1273 = vmatprep.subr.bf16.mxu0 %v997
    %1274 = vmatpush1.bf16.msra.mxu0 %v996
    %1275 = vmatprep.subr.bf16.mxu0 %v1001
    %1276 = vmatpush1.bf16.msra.mxu0 %v1000
    %1277 = vmatprep.mubr.bf16.mxu0 %v431
    %1278 = vmatmul.mubr.bf16.gmra.mrb[0].mxu0 %v430
    %v1279 = vpop.f32.mrb[0].mxu0
    %v1280 = vadd.f32 %v1167, %v1279
    %v1281 = vpop.f32.mrb[0].mxu0
    %v1282 = vadd.f32 %v1169, %v1281
    %v1283 = vpop.f32.mrb[0].mxu0
    %v1284 = vadd.f32 %v1171, %v1283
    %v1285 = vpop.f32.mrb[0].mxu0
    %v1286 = vadd.f32 %v1173, %v1285
    %1287 = vmatprep.mubr.bf16.mxu0 %v435
    %1288 = vmatmul.mubr.bf16.gmra.mrb[0].mxu0 %v434
    %v1289 = vpop.f32.mrb[0].mxu0
    %v1290 = vadd.f32 %v1177, %v1289
    %v1291 = vpop.f32.mrb[0].mxu0
    %v1292 = vadd.f32 %v1179, %v1291
    %v1293 = vpop.f32.mrb[0].mxu0
    %v1294 = vadd.f32 %v1181, %v1293
    %v1295 = vpop.f32.mrb[0].mxu0
    %v1296 = vadd.f32 %v1183, %v1295
    %1297 = vmatprep.mubr.bf16.mxu0 %v439
    %1298 = vmatmul.mubr.bf16.gmra.mrb[0].mxu0 %v438
    %v1299 = vpop.f32.mrb[0].mxu0
    %v1300 = vadd.f32 %v1187, %v1299
    %v1301 = vpop.f32.mrb[0].mxu0
    %v1302 = vadd.f32 %v1189, %v1301
    %v1303 = vpop.f32.mrb[0].mxu0
    %v1304 = vadd.f32 %v1191, %v1303
    %v1305 = vpop.f32.mrb[0].mxu0
    %v1306 = vadd.f32 %v1193, %v1305
    %1307 = vmatprep.mubr.bf16.mxu0 %v443
    %1308 = vmatmul.mubr.bf16.gmra.mrb[0].mxu0 %v442
    %v1309 = vpop.f32.mrb[0].mxu0
    %v1310 = vadd.f32 %v1197, %v1309
    %v1311 = vpop.f32.mrb[0].mxu0
    %v1312 = vadd.f32 %v1199, %v1311
    %v1313 = vpop.f32.mrb[0].mxu0
    %v1314 = vadd.f32 %v1201, %v1313
    %v1315 = vpop.f32.mrb[0].mxu0
    %v1316 = vadd.f32 %v1203, %v1315
    %1317 = vmatprep.mubr.bf16.mxu0 %v447
    %1318 = vmatmul.mubr.bf16.gmra.mrb[0].mxu0 %v446
    %v1319 = vpop.f32.mrb[0].mxu0
    %v1320 = vadd.f32 %v1207, %v1319
    %v1321 = vpop.f32.mrb[0].mxu0
    %v1322 = vadd.f32 %v1209, %v1321
    %v1323 = vpop.f32.mrb[0].mxu0
    %v1324 = vadd.f32 %v1211, %v1323
    %v1325 = vpop.f32.mrb[0].mxu0
    %v1326 = vadd.f32 %v1213, %v1325
    %1327 = vmatprep.mubr.bf16.mxu0 %v451
    %1328 = vmatmul.mubr.bf16.gmra.mrb[0].mxu0 %v450
    %v1329 = vpop.f32.mrb[0].mxu0
    %v1330 = vadd.f32 %v1217, %v1329
    %v1331 = vpop.f32.mrb[0].mxu0
    %v1332 = vadd.f32 %v1219, %v1331
    %v1333 = vpop.f32.mrb[0].mxu0
    %v1334 = vadd.f32 %v1221, %v1333
    %v1335 = vpop.f32.mrb[0].mxu0
    %v1336 = vadd.f32 %v1223, %v1335
    %1337 = vmatprep.mubr.bf16.mxu0 %v455
    %1338 = vmatmul.mubr.bf16.gmra.mrb[0].mxu0 %v454
    %v1339 = vpop.f32.mrb[0].mxu0
    %v1340 = vadd.f32 %v1227, %v1339
    %v1341 = vpop.f32.mrb[0].mxu0
    %v1342 = vadd.f32 %v1229, %v1341
    %v1343 = vpop.f32.mrb[0].mxu0
    %v1344 = vadd.f32 %v1231, %v1343
    %v1345 = vpop.f32.mrb[0].mxu0
    %v1346 = vadd.f32 %v1233, %v1345
    %1347 = vmatprep.mubr.bf16.mxu0 %v459
    %1348 = vmatmul.mubr.bf16.gmra.mrb[0].mxu0 %v458
    %v1349 = vpop.f32.mrb[0].mxu0
    %v1350 = vadd.f32 %v1237, %v1349
    %v1351 = vpop.f32.mrb[0].mxu0
    %v1352 = vadd.f32 %v1239, %v1351
    %v1353 = vpop.f32.mrb[0].mxu0
    %v1354 = vadd.f32 %v1241, %v1353
    %v1355 = vpop.f32.mrb[0].mxu0
    %v1356 = vadd.f32 %v1243, %v1355
    %1357 = vdwg.mxu0
    %1358 = vmatprep.subr.bf16.mxu0 %v879
    %1359 = vmatpush1.bf16.msra.mxu0 %v878
    %1360 = vmatprep.subr.bf16.mxu0 %v883
    %1361 = vmatpush1.bf16.msra.mxu0 %v882
    %1362 = vmatprep.subr.bf16.mxu0 %v887
    %1363 = vmatpush1.bf16.msra.mxu0 %v886
    %1364 = vmatprep.subr.bf16.mxu0 %v891
    %1365 = vmatpush1.bf16.msra.mxu0 %v890
    %1366 = vmatprep.subr.bf16.mxu0 %v895
    %1367 = vmatpush1.bf16.msra.mxu0 %v894
    %1368 = vmatprep.subr.bf16.mxu0 %v899
    %1369 = vmatpush1.bf16.msra.mxu0 %v898
    %1370 = vmatprep.subr.bf16.mxu0 %v903
    %1371 = vmatpush1.bf16.msra.mxu0 %v902
    %1372 = vmatprep.subr.bf16.mxu0 %v907
    %1373 = vmatpush1.bf16.msra.mxu0 %v906
    %1374 = vmatprep.subr.bf16.mxu0 %v911
    %1375 = vmatpush1.bf16.msra.mxu0 %v910
    %1376 = vmatprep.subr.bf16.mxu0 %v915
    %1377 = vmatpush1.bf16.msra.mxu0 %v914
    %1378 = vmatprep.subr.bf16.mxu0 %v919
    %1379 = vmatpush1.bf16.msra.mxu0 %v918
    %1380 = vmatprep.subr.bf16.mxu0 %v923
    %1381 = vmatpush1.bf16.msra.mxu0 %v922
    %1382 = vmatprep.subr.bf16.mxu0 %v927
    %1383 = vmatpush1.bf16.msra.mxu0 %v926
    %1384 = vmatprep.subr.bf16.mxu0 %v931
    %1385 = vmatpush1.bf16.msra.mxu0 %v930
    %1386 = vmatprep.subr.bf16.mxu0 %v935
    %1387 = vmatpush1.bf16.msra.mxu0 %v934
    %1388 = vmatprep.subr.bf16.mxu0 %v939
    %1389 = vmatpush1.bf16.msra.mxu0 %v938
    %1390 = vmatprep.mubr.bf16.mxu0 %v429
    %1391 = vmatmul.mubr.bf16.gmra.mrb[0].mxu0 %v428
    %v1392 = vpop.f32.mrb[0].mxu0
    %v1393 = vadd.f32 0.0, %v1392
    %v1394 = vpop.f32.mrb[0].mxu0
    %v1395 = vadd.f32 0.0, %v1394
    %v1396 = vpop.f32.mrb[0].mxu0
    %v1397 = vadd.f32 0.0, %v1396
    %v1398 = vpop.f32.mrb[0].mxu0
    %v1399 = vadd.f32 0.0, %v1398
    %1400 = vmatprep.mubr.bf16.mxu0 %v433
    %1401 = vmatmul.mubr.bf16.gmra.mrb[0].mxu0 %v432
    %v1402 = vpop.f32.mrb[0].mxu0
    %v1403 = vadd.f32 0.0, %v1402
    %v1404 = vpop.f32.mrb[0].mxu0
    %v1405 = vadd.f32 0.0, %v1404
    %v1406 = vpop.f32.mrb[0].mxu0
    %v1407 = vadd.f32 0.0, %v1406
    %v1408 = vpop.f32.mrb[0].mxu0
    %v1409 = vadd.f32 0.0, %v1408
    %1410 = vmatprep.mubr.bf16.mxu0 %v437
    %1411 = vmatmul.mubr.bf16.gmra.mrb[0].mxu0 %v436
    %v1412 = vpop.f32.mrb[0].mxu0
    %v1413 = vadd.f32 0.0, %v1412
    %v1414 = vpop.f32.mrb[0].mxu0
    %v1415 = vadd.f32 0.0, %v1414
    %v1416 = vpop.f32.mrb[0].mxu0
    %v1417 = vadd.f32 0.0, %v1416
    %v1418 = vpop.f32.mrb[0].mxu0
    %v1419 = vadd.f32 0.0, %v1418
    %1420 = vmatprep.mubr.bf16.mxu0 %v441
    %1421 = vmatmul.mubr.bf16.gmra.mrb[0].mxu0 %v440
    %v1422 = vpop.f32.mrb[0].mxu0
    %v1423 = vadd.f32 0.0, %v1422
    %v1424 = vpop.f32.mrb[0].mxu0
    %v1425 = vadd.f32 0.0, %v1424
    %v1426 = vpop.f32.mrb[0].mxu0
    %v1427 = vadd.f32 0.0, %v1426
    %v1428 = vpop.f32.mrb[0].mxu0
    %v1429 = vadd.f32 0.0, %v1428
    %1430 = vmatprep.mubr.bf16.mxu0 %v445
    %1431 = vmatmul.mubr.bf16.gmra.mrb[0].mxu0 %v444
    %v1432 = vpop.f32.mrb[0].mxu0
    %v1433 = vadd.f32 0.0, %v1432
    %v1434 = vpop.f32.mrb[0].mxu0
    %v1435 = vadd.f32 0.0, %v1434
    %v1436 = vpop.f32.mrb[0].mxu0
    %v1437 = vadd.f32 0.0, %v1436
    %v1438 = vpop.f32.mrb[0].mxu0
    %v1439 = vadd.f32 0.0, %v1438
    %1440 = vmatprep.mubr.bf16.mxu0 %v449
    %1441 = vmatmul.mubr.bf16.gmra.mrb[0].mxu0 %v448
    %v1442 = vpop.f32.mrb[0].mxu0
    %v1443 = vadd.f32 0.0, %v1442
    %v1444 = vpop.f32.mrb[0].mxu0
    %v1445 = vadd.f32 0.0, %v1444
    %v1446 = vpop.f32.mrb[0].mxu0
    %v1447 = vadd.f32 0.0, %v1446
    %v1448 = vpop.f32.mrb[0].mxu0
    %v1449 = vadd.f32 0.0, %v1448
    %1450 = vmatprep.mubr.bf16.mxu0 %v453
    %1451 = vmatmul.mubr.bf16.gmra.mrb[0].mxu0 %v452
    %v1452 = vpop.f32.mrb[0].mxu0
    %v1453 = vadd.f32 0.0, %v1452
    %v1454 = vpop.f32.mrb[0].mxu0
    %v1455 = vadd.f32 0.0, %v1454
    %v1456 = vpop.f32.mrb[0].mxu0
    %v1457 = vadd.f32 0.0, %v1456
    %v1458 = vpop.f32.mrb[0].mxu0
    %v1459 = vadd.f32 0.0, %v1458
    %1460 = vmatprep.mubr.bf16.mxu0 %v457
    %1461 = vmatmul.mubr.bf16.gmra.mrb[0].mxu0 %v456
    %v1462 = vpop.f32.mrb[0].mxu0
    %v1463 = vadd.f32 0.0, %v1462
    %v1464 = vpop.f32.mrb[0].mxu0
    %v1465 = vadd.f32 0.0, %v1464
    %v1466 = vpop.f32.mrb[0].mxu0
    %v1467 = vadd.f32 0.0, %v1466
    %v1468 = vpop.f32.mrb[0].mxu0
    %v1469 = vadd.f32 0.0, %v1468
    %1470 = vdwg.mxu0
    %1471 = vmatprep.subr.bf16.mxu0 %v943
    %1472 = vmatpush1.bf16.msra.mxu0 %v942
    %1473 = vmatprep.subr.bf16.mxu0 %v947
    %1474 = vmatpush1.bf16.msra.mxu0 %v946
    %1475 = vmatprep.subr.bf16.mxu0 %v951
    %1476 = vmatpush1.bf16.msra.mxu0 %v950
    %1477 = vmatprep.subr.bf16.mxu0 %v955
    %1478 = vmatpush1.bf16.msra.mxu0 %v954
    %1479 = vmatprep.subr.bf16.mxu0 %v959
    %1480 = vmatpush1.bf16.msra.mxu0 %v958
    %1481 = vmatprep.subr.bf16.mxu0 %v963
    %1482 = vmatpush1.bf16.msra.mxu0 %v962
    %1483 = vmatprep.subr.bf16.mxu0 %v967
    %1484 = vmatpush1.bf16.msra.mxu0 %v966
    %1485 = vmatprep.subr.bf16.mxu0 %v971
    %1486 = vmatpush1.bf16.msra.mxu0 %v970
    %1487 = vmatprep.subr.bf16.mxu0 %v975
    %1488 = vmatpush1.bf16.msra.mxu0 %v974
    %1489 = vmatprep.subr.bf16.mxu0 %v979
    %1490 = vmatpush1.bf16.msra.mxu0 %v978
    %1491 = vmatprep.subr.bf16.mxu0 %v983
    %1492 = vmatpush1.bf16.msra.mxu0 %v982
    %1493 = vmatprep.subr.bf16.mxu0 %v987
    %1494 = vmatpush1.bf16.msra.mxu0 %v986
    %1495 = vmatprep.subr.bf16.mxu0 %v991
    %1496 = vmatpush1.bf16.msra.mxu0 %v990
    %1497 = vmatprep.subr.bf16.mxu0 %v995
    %1498 = vmatpush1.bf16.msra.mxu0 %v994
    %1499 = vmatprep.subr.bf16.mxu0 %v999
    %1500 = vmatpush1.bf16.msra.mxu0 %v998
    %1501 = vmatprep.subr.bf16.mxu0 %v1003
    %1502 = vmatpush1.bf16.msra.mxu0 %v1002
    %1503 = vmatprep.mubr.bf16.mxu0 %v431
    %1504 = vmatmul.mubr.bf16.gmra.mrb[0].mxu0 %v430
    %v1505 = vpop.f32.mrb[0].mxu0
    %v1506 = vadd.f32 %v1393, %v1505
    %v1507 = vpop.f32.mrb[0].mxu0
    %v1508 = vadd.f32 %v1395, %v1507
    %v1509 = vpop.f32.mrb[0].mxu0
    %v1510 = vadd.f32 %v1397, %v1509
    %v1511 = vpop.f32.mrb[0].mxu0
    %v1512 = vadd.f32 %v1399, %v1511
    %1513 = vmatprep.mubr.bf16.mxu0 %v435
    %1514 = vmatmul.mubr.bf16.gmra.mrb[0].mxu0 %v434
    %v1515 = vpop.f32.mrb[0].mxu0
    %v1516 = vadd.f32 %v1403, %v1515
    %v1517 = vpop.f32.mrb[0].mxu0
    %v1518 = vadd.f32 %v1405, %v1517
    %v1519 = vpop.f32.mrb[0].mxu0
    %v1520 = vadd.f32 %v1407, %v1519
    %v1521 = vpop.f32.mrb[0].mxu0
    %v1522 = vadd.f32 %v1409, %v1521
    %1523 = vmatprep.mubr.bf16.mxu0 %v439
    %1524 = vmatmul.mubr.bf16.gmra.mrb[0].mxu0 %v438
    %v1525 = vpop.f32.mrb[0].mxu0
    %v1526 = vadd.f32 %v1413, %v1525
    %v1527 = vpop.f32.mrb[0].mxu0
    %v1528 = vadd.f32 %v1415, %v1527
    %v1529 = vpop.f32.mrb[0].mxu0
    %v1530 = vadd.f32 %v1417, %v1529
    %v1531 = vpop.f32.mrb[0].mxu0
    %v1532 = vadd.f32 %v1419, %v1531
    %1533 = vmatprep.mubr.bf16.mxu0 %v443
    %1534 = vmatmul.mubr.bf16.gmra.mrb[0].mxu0 %v442
    %v1535 = vpop.f32.mrb[0].mxu0
    %v1536 = vadd.f32 %v1423, %v1535
    %v1537 = vpop.f32.mrb[0].mxu0
    %v1538 = vadd.f32 %v1425, %v1537
    %v1539 = vpop.f32.mrb[0].mxu0
    %v1540 = vadd.f32 %v1427, %v1539
    %v1541 = vpop.f32.mrb[0].mxu0
    %v1542 = vadd.f32 %v1429, %v1541
    %1543 = vmatprep.mubr.bf16.mxu0 %v447
    %1544 = vmatmul.mubr.bf16.gmra.mrb[0].mxu0 %v446
    %v1545 = vpop.f32.mrb[0].mxu0
    %v1546 = vadd.f32 %v1433, %v1545
    %v1547 = vpop.f32.mrb[0].mxu0
    %v1548 = vadd.f32 %v1435, %v1547
    %v1549 = vpop.f32.mrb[0].mxu0
    %v1550 = vadd.f32 %v1437, %v1549
    %v1551 = vpop.f32.mrb[0].mxu0
    %v1552 = vadd.f32 %v1439, %v1551
    %1553 = vmatprep.mubr.bf16.mxu0 %v451
    %1554 = vmatmul.mubr.bf16.gmra.mrb[0].mxu0 %v450
    %v1555 = vpop.f32.mrb[0].mxu0
    %v1556 = vadd.f32 %v1443, %v1555
    %v1557 = vpop.f32.mrb[0].mxu0
    %v1558 = vadd.f32 %v1445, %v1557
    %v1559 = vpop.f32.mrb[0].mxu0
    %v1560 = vadd.f32 %v1447, %v1559
    %v1561 = vpop.f32.mrb[0].mxu0
    %v1562 = vadd.f32 %v1449, %v1561
    %1563 = vmatprep.mubr.bf16.mxu0 %v455
    %1564 = vmatmul.mubr.bf16.gmra.mrb[0].mxu0 %v454
    %v1565 = vpop.f32.mrb[0].mxu0
    %v1566 = vadd.f32 %v1453, %v1565
    %v1567 = vpop.f32.mrb[0].mxu0
    %v1568 = vadd.f32 %v1455, %v1567
    %v1569 = vpop.f32.mrb[0].mxu0
    %v1570 = vadd.f32 %v1457, %v1569
    %v1571 = vpop.f32.mrb[0].mxu0
    %v1572 = vadd.f32 %v1459, %v1571
    %1573 = vmatprep.mubr.bf16.mxu0 %v459
    %1574 = vmatmul.mubr.bf16.gmra.mrb[0].mxu0 %v458
    %v1575 = vpop.f32.mrb[0].mxu0
    %v1576 = vadd.f32 %v1463, %v1575
    %v1577 = vpop.f32.mrb[0].mxu0
    %v1578 = vadd.f32 %v1465, %v1577
    %v1579 = vpop.f32.mrb[0].mxu0
    %v1580 = vadd.f32 %v1467, %v1579
    %v1581 = vpop.f32.mrb[0].mxu0
    %v1582 = vadd.f32 %v1469, %v1581
    %1583 = vdwg.mxu0
    %v1584 = vadd.f32 %v108, %v1280
    %v1585 = vadd.f32 %v109, %v1282
    %v1586 = vadd.f32 %v110, %v1506
    %v1587 = vadd.f32 %v111, %v1508
    %v1588 = vadd.f32 %v112, %v1284
    %v1589 = vadd.f32 %v113, %v1286
    %v1590 = vadd.f32 %v114, %v1510
    %v1591 = vadd.f32 %v115, %v1512
    %v1592 = vadd.f32 %v116, %v1290
    %v1593 = vadd.f32 %v117, %v1292
    %v1594 = vadd.f32 %v118, %v1516
    %v1595 = vadd.f32 %v119, %v1518
    %v1596 = vadd.f32 %v120, %v1294
    %v1597 = vadd.f32 %v121, %v1296
    %v1598 = vadd.f32 %v122, %v1520
    %v1599 = vadd.f32 %v123, %v1522
    %v1600 = vadd.f32 %v124, %v1300
    %v1601 = vadd.f32 %v125, %v1302
    %v1602 = vadd.f32 %v126, %v1526
    %v1603 = vadd.f32 %v127, %v1528
    %v1604 = vadd.f32 %v128, %v1304
    %v1605 = vadd.f32 %v129, %v1306
    %v1606 = vadd.f32 %v130, %v1530
    %v1607 = vadd.f32 %v131, %v1532
    %v1608 = vadd.f32 %v132, %v1310
    %v1609 = vadd.f32 %v133, %v1312
    %v1610 = vadd.f32 %v134, %v1536
    %v1611 = vadd.f32 %v135, %v1538
    %v1612 = vadd.f32 %v136, %v1314
    %v1613 = vadd.f32 %v137, %v1316
    %v1614 = vadd.f32 %v138, %v1540
    %v1615 = vadd.f32 %v139, %v1542
    %v1616 = vadd.f32 %v140, %v1320
    %v1617 = vadd.f32 %v141, %v1322
    %v1618 = vadd.f32 %v142, %v1546
    %v1619 = vadd.f32 %v143, %v1548
    %v1620 = vadd.f32 %v144, %v1324
    %v1621 = vadd.f32 %v145, %v1326
    %v1622 = vadd.f32 %v146, %v1550
    %v1623 = vadd.f32 %v147, %v1552
    %v1624 = vadd.f32 %v148, %v1330
    %v1625 = vadd.f32 %v149, %v1332
    %v1626 = vadd.f32 %v150, %v1556
    %v1627 = vadd.f32 %v151, %v1558
    %v1628 = vadd.f32 %v152, %v1334
    %v1629 = vadd.f32 %v153, %v1336
    %v1630 = vadd.f32 %v154, %v1560
    %v1631 = vadd.f32 %v155, %v1562
    %v1632 = vadd.f32 %v156, %v1340
    %v1633 = vadd.f32 %v157, %v1342
    %v1634 = vadd.f32 %v158, %v1566
    %v1635 = vadd.f32 %v159, %v1568
    %v1636 = vadd.f32 %v160, %v1344
    %v1637 = vadd.f32 %v161, %v1346
    %v1638 = vadd.f32 %v162, %v1570
    %v1639 = vadd.f32 %v163, %v1572
    %v1640 = vadd.f32 %v164, %v1350
    %v1641 = vadd.f32 %v165, %v1352
    %v1642 = vadd.f32 %v166, %v1576
    %v1643 = vadd.f32 %v167, %v1578
    %v1644 = vadd.f32 %v168, %v1354
    %v1645 = vadd.f32 %v169, %v1356
    %v1646 = vadd.f32 %v170, %v1580
    %v1647 = vadd.f32 %v171, %v1582
    %1648 = vst [vmem:[#allocation2] sm:$0xff] %v1584
    %1649 = vst [vmem:[#allocation2 + $0x8] sm:$0xff] %v1585
    %1650 = vst [vmem:[#allocation2 + $0x10] sm:$0xff] %v1586
    %1651 = vst [vmem:[#allocation2 + $0x18] sm:$0xff] %v1587
    %1652 = vst [vmem:[#allocation2 + $0x20] sm:$0xff] %v1588
    %1653 = vst [vmem:[#allocation2 + $0x28] sm:$0xff] %v1589
    %1654 = vst [vmem:[#allocation2 + $0x30] sm:$0xff] %v1590
    %1655 = vst [vmem:[#allocation2 + $0x38] sm:$0xff] %v1591
    %1656 = vst [vmem:[#allocation2 + $0x40] sm:$0xff] %v1592
    %1657 = vst [vmem:[#allocation2 + $0x48] sm:$0xff] %v1593
    %1658 = vst [vmem:[#allocation2 + $0x50] sm:$0xff] %v1594
    %1659 = vst [vmem:[#allocation2 + $0x58] sm:$0xff] %v1595
    %1660 = vst [vmem:[#allocation2 + $0x60] sm:$0xff] %v1596
    %1661 = vst [vmem:[#allocation2 + $0x68] sm:$0xff] %v1597
    %1662 = vst [vmem:[#allocation2 + $0x70] sm:$0xff] %v1598
    %1663 = vst [vmem:[#allocation2 + $0x78] sm:$0xff] %v1599
    %1664 = vst [vmem:[#allocation2 + $0x80] sm:$0xff] %v1600
    %1665 = vst [vmem:[#allocation2 + $0x88] sm:$0xff] %v1601
    %1666 = vst [vmem:[#allocation2 + $0x90] sm:$0xff] %v1602
    %1667 = vst [vmem:[#allocation2 + $0x98] sm:$0xff] %v1603
    %1668 = vst [vmem:[#allocation2 + $0xa0] sm:$0xff] %v1604
    %1669 = vst [vmem:[#allocation2 + $0xa8] sm:$0xff] %v1605
    %1670 = vst [vmem:[#allocation2 + $0xb0] sm:$0xff] %v1606
    %1671 = vst [vmem:[#allocation2 + $0xb8] sm:$0xff] %v1607
    %1672 = vst [vmem:[#allocation2 + $0xc0] sm:$0xff] %v1608
    %1673 = vst [vmem:[#allocation2 + $0xc8] sm:$0xff] %v1609
    %1674 = vst [vmem:[#allocation2 + $0xd0] sm:$0xff] %v1610
    %1675 = vst [vmem:[#allocation2 + $0xd8] sm:$0xff] %v1611
    %1676 = vst [vmem:[#allocation2 + $0xe0] sm:$0xff] %v1612
    %1677 = vst [vmem:[#allocation2 + $0xe8] sm:$0xff] %v1613
    %1678 = vst [vmem:[#allocation2 + $0xf0] sm:$0xff] %v1614
    %1679 = vst [vmem:[#allocation2 + $0xf8] sm:$0xff] %v1615
    %1680 = vst [vmem:[#allocation2 + $0x100] sm:$0xff] %v1616
    %1681 = vst [vmem:[#allocation2 + $0x108] sm:$0xff] %v1617
    %1682 = vst [vmem:[#allocation2 + $0x110] sm:$0xff] %v1618
    %1683 = vst [vmem:[#allocation2 + $0x118] sm:$0xff] %v1619
    %1684 = vst [vmem:[#allocation2 + $0x120] sm:$0xff] %v1620
    %1685 = vst [vmem:[#allocation2 + $0x128] sm:$0xff] %v1621
    %1686 = vst [vmem:[#allocation2 + $0x130] sm:$0xff] %v1622
    %1687 = vst [vmem:[#allocation2 + $0x138] sm:$0xff] %v1623
    %1688 = vst [vmem:[#allocation2 + $0x140] sm:$0xff] %v1624
    %1689 = vst [vmem:[#allocation2 + $0x148] sm:$0xff] %v1625
    %1690 = vst [vmem:[#allocation2 + $0x150] sm:$0xff] %v1626
    %1691 = vst [vmem:[#allocation2 + $0x158] sm:$0xff] %v1627
    %1692 = vst [vmem:[#allocation2 + $0x160] sm:$0xff] %v1628
    %1693 = vst [vmem:[#allocation2 + $0x168] sm:$0xff] %v1629
    %1694 = vst [vmem:[#allocation2 + $0x170] sm:$0xff] %v1630
    %1695 = vst [vmem:[#allocation2 + $0x178] sm:$0xff] %v1631
    %1696 = vst [vmem:[#allocation2 + $0x180] sm:$0xff] %v1632
    %1697 = vst [vmem:[#allocation2 + $0x188] sm:$0xff] %v1633
    %1698 = vst [vmem:[#allocation2 + $0x190] sm:$0xff] %v1634
    %1699 = vst [vmem:[#allocation2 + $0x198] sm:$0xff] %v1635
    %1700 = vst [vmem:[#allocation2 + $0x1a0] sm:$0xff] %v1636
    %1701 = vst [vmem:[#allocation2 + $0x1a8] sm:$0xff] %v1637
    %1702 = vst [vmem:[#allocation2 + $0x1b0] sm:$0xff] %v1638
    %1703 = vst [vmem:[#allocation2 + $0x1b8] sm:$0xff] %v1639
    %1704 = vst [vmem:[#allocation2 + $0x1c0] sm:$0xff] %v1640
    %1705 = vst [vmem:[#allocation2 + $0x1c8] sm:$0xff] %v1641
    %1706 = vst [vmem:[#allocation2 + $0x1d0] sm:$0xff] %v1642
    %1707 = vst [vmem:[#allocation2 + $0x1d8] sm:$0xff] %v1643
    %1708 = vst [vmem:[#allocation2 + $0x1e0] sm:$0xff] %v1644
    %1709 = vst [vmem:[#allocation2 + $0x1e8] sm:$0xff] %v1645
    %1710 = vst [vmem:[#allocation2 + $0x1f0] sm:$0xff] %v1646
    %1711 = vst [vmem:[#allocation2 + $0x1f8] sm:$0xff] %v1647
    // Predicated region
    $region22: #{tpu_custom_call.1} parent=1 // pred_check
      %p1712 = pneg %p40
    $region23: #{tpu_custom_call.1} parent=1 // pred_check_branch
      %1714 = sbr.rel (%p1712) target = $region25
    $region24: #{tpu_custom_call.1} parent=1 // pred_region
      %v1715 = vld [vmem:[#allocation2] sm:$0xff]
      %v1716 = vld [vmem:[#allocation2 + $0x8] sm:$0xff]
      %v1717 = vld [vmem:[#allocation2 + $0x10] sm:$0xff]
      %v1718 = vld [vmem:[#allocation2 + $0x18] sm:$0xff]
      %v1719 = vld [vmem:[#allocation2 + $0x20] sm:$0xff]
      %v1720 = vld [vmem:[#allocation2 + $0x28] sm:$0xff]
      %v1721 = vld [vmem:[#allocation2 + $0x30] sm:$0xff]
      %v1722 = vld [vmem:[#allocation2 + $0x38] sm:$0xff]
      %v1723 = vld [vmem:[#allocation2 + $0x40] sm:$0xff]
      %v1724 = vld [vmem:[#allocation2 + $0x48] sm:$0xff]
      %v1725 = vld [vmem:[#allocation2 + $0x50] sm:$0xff]
      %v1726 = vld [vmem:[#allocation2 + $0x58] sm:$0xff]
      %v1727 = vld [vmem:[#allocation2 + $0x60] sm:$0xff]
      %v1728 = vld [vmem:[#allocation2 + $0x68] sm:$0xff]
      %v1729 = vld [vmem:[#allocation2 + $0x70] sm:$0xff]
      %v1730 = vld [vmem:[#allocation2 + $0x78] sm:$0xff]
      %v1731 = vld [vmem:[#allocation2 + $0x80] sm:$0xff]
      %v1732 = vld [vmem:[#allocation2 + $0x88] sm:$0xff]
      %v1733 = vld [vmem:[#allocation2 + $0x90] sm:$0xff]
      %v1734 = vld [vmem:[#allocation2 + $0x98] sm:$0xff]
      %v1735 = vld [vmem:[#allocation2 + $0xa0] sm:$0xff]
      %v1736 = vld [vmem:[#allocation2 + $0xa8] sm:$0xff]
      %v1737 = vld [vmem:[#allocation2 + $0xb0] sm:$0xff]
      %v1738 = vld [vmem:[#allocation2 + $0xb8] sm:$0xff]
      %v1739 = vld [vmem:[#allocation2 + $0xc0] sm:$0xff]
      %v1740 = vld [vmem:[#allocation2 + $0xc8] sm:$0xff]
      %v1741 = vld [vmem:[#allocation2 + $0xd0] sm:$0xff]
      %v1742 = vld [vmem:[#allocation2 + $0xd8] sm:$0xff]
      %v1743 = vld [vmem:[#allocation2 + $0xe0] sm:$0xff]
      %v1744 = vld [vmem:[#allocation2 + $0xe8] sm:$0xff]
      %v1745 = vld [vmem:[#allocation2 + $0xf0] sm:$0xff]
      %v1746 = vld [vmem:[#allocation2 + $0xf8] sm:$0xff]
      %v1747 = vld [vmem:[#allocation2 + $0x100] sm:$0xff]
      %v1748 = vld [vmem:[#allocation2 + $0x108] sm:$0xff]
      %v1749 = vld [vmem:[#allocation2 + $0x110] sm:$0xff]
      %v1750 = vld [vmem:[#allocation2 + $0x118] sm:$0xff]
      %v1751 = vld [vmem:[#allocation2 + $0x120] sm:$0xff]
      %v1752 = vld [vmem:[#allocation2 + $0x128] sm:$0xff]
      %v1753 = vld [vmem:[#allocation2 + $0x130] sm:$0xff]
      %v1754 = vld [vmem:[#allocation2 + $0x138] sm:$0xff]
      %v1755 = vld [vmem:[#allocation2 + $0x140] sm:$0xff]
      %v1756 = vld [vmem:[#allocation2 + $0x148] sm:$0xff]
      %v1757 = vld [vmem:[#allocation2 + $0x150] sm:$0xff]
      %v1758 = vld [vmem:[#allocation2 + $0x158] sm:$0xff]
      %v1759 = vld [vmem:[#allocation2 + $0x160] sm:$0xff]
      %v1760 = vld [vmem:[#allocation2 + $0x168] sm:$0xff]
      %v1761 = vld [vmem:[#allocation2 + $0x170] sm:$0xff]
      %v1762 = vld [vmem:[#allocation2 + $0x178] sm:$0xff]
      %v1763 = vld [vmem:[#allocation2 + $0x180] sm:$0xff]
      %v1764 = vld [vmem:[#allocation2 + $0x188] sm:$0xff]
      %v1765 = vld [vmem:[#allocation2 + $0x190] sm:$0xff]
      %v1766 = vld [vmem:[#allocation2 + $0x198] sm:$0xff]
      %v1767 = vld [vmem:[#allocation2 + $0x1a0] sm:$0xff]
      %v1768 = vld [vmem:[#allocation2 + $0x1a8] sm:$0xff]
      %v1769 = vld [vmem:[#allocation2 + $0x1b0] sm:$0xff]
      %v1770 = vld [vmem:[#allocation2 + $0x1b8] sm:$0xff]
      %v1771 = vld [vmem:[#allocation2 + $0x1c0] sm:$0xff]
      %v1772 = vld [vmem:[#allocation2 + $0x1c8] sm:$0xff]
      %v1773 = vld [vmem:[#allocation2 + $0x1d0] sm:$0xff]
      %v1774 = vld [vmem:[#allocation2 + $0x1d8] sm:$0xff]
      %v1775 = vld [vmem:[#allocation2 + $0x1e0] sm:$0xff]
      %v1776 = vld [vmem:[#allocation2 + $0x1e8] sm:$0xff]
      %v1777 = vld [vmem:[#allocation2 + $0x1f0] sm:$0xff]
      %v1778 = vld [vmem:[#allocation2 + $0x1f8] sm:$0xff]
      %v1779 = vpack.c.bf16 %v1719, %v1715
      %v1780 = vpack.c.bf16 %v1720, %v1716
      %v1781 = vpack.c.bf16 %v1721, %v1717
      %v1782 = vpack.c.bf16 %v1722, %v1718
      %v1783 = vpack.c.bf16 %v1727, %v1723
      %v1784 = vpack.c.bf16 %v1728, %v1724
      %v1785 = vpack.c.bf16 %v1729, %v1725
      %v1786 = vpack.c.bf16 %v1730, %v1726
      %v1787 = vpack.c.bf16 %v1735, %v1731
      %v1788 = vpack.c.bf16 %v1736, %v1732
      %v1789 = vpack.c.bf16 %v1737, %v1733
      %v1790 = vpack.c.bf16 %v1738, %v1734
      %v1791 = vpack.c.bf16 %v1743, %v1739
      %v1792 = vpack.c.bf16 %v1744, %v1740
      %v1793 = vpack.c.bf16 %v1745, %v1741
      %v1794 = vpack.c.bf16 %v1746, %v1742
      %v1795 = vpack.c.bf16 %v1751, %v1747
      %v1796 = vpack.c.bf16 %v1752, %v1748
      %v1797 = vpack.c.bf16 %v1753, %v1749
      %v1798 = vpack.c.bf16 %v1754, %v1750
      %v1799 = vpack.c.bf16 %v1759, %v1755
      %v1800 = vpack.c.bf16 %v1760, %v1756
      %v1801 = vpack.c.bf16 %v1761, %v1757
      %v1802 = vpack.c.bf16 %v1762, %v1758
      %v1803 = vpack.c.bf16 %v1767, %v1763
      %v1804 = vpack.c.bf16 %v1768, %v1764
      %v1805 = vpack.c.bf16 %v1769, %v1765
      %v1806 = vpack.c.bf16 %v1770, %v1766
      %v1807 = vpack.c.bf16 %v1775, %v1771
      %v1808 = vpack.c.bf16 %v1776, %v1772
      %v1809 = vpack.c.bf16 %v1777, %v1773
      %v1810 = vpack.c.bf16 %v1778, %v1774
      %v1843 = vunpack.c.l.b16 %v1779
      %v1844 = vunpack.c.l.b16 %v1780
      %v1845 = vunpack.c.l.b16 %v1781
      %v1846 = vunpack.c.l.b16 %v1782
      %v1847 = vunpack.c.h.b16 %v1779
      %v1848 = vunpack.c.h.b16 %v1780
      %v1849 = vunpack.c.h.b16 %v1781
      %v1850 = vunpack.c.h.b16 %v1782
      %v1851 = vunpack.c.l.b16 %v1783
      %v1852 = vunpack.c.l.b16 %v1784
      %v1853 = vunpack.c.l.b16 %v1785
      %v1854 = vunpack.c.l.b16 %v1786
      %v1855 = vunpack.c.h.b16 %v1783
      %v1856 = vunpack.c.h.b16 %v1784
      %v1857 = vunpack.c.h.b16 %v1785
      %v1858 = vunpack.c.h.b16 %v1786
      %v1859 = vunpack.c.l.b16 %v1787
      %v1860 = vunpack.c.l.b16 %v1788
      %v1861 = vunpack.c.l.b16 %v1789
      %v1862 = vunpack.c.l.b16 %v1790
      %v1863 = vunpack.c.h.b16 %v1787
      %v1864 = vunpack.c.h.b16 %v1788
      %v1865 = vunpack.c.h.b16 %v1789
      %v1866 = vunpack.c.h.b16 %v1790
      %v1867 = vunpack.c.l.b16 %v1791
      %v1868 = vunpack.c.l.b16 %v1792
      %v1869 = vunpack.c.l.b16 %v1793
      %v1870 = vunpack.c.l.b16 %v1794
      %v1871 = vunpack.c.h.b16 %v1791
      %v1872 = vunpack.c.h.b16 %v1792
      %v1873 = vunpack.c.h.b16 %v1793
      %v1874 = vunpack.c.h.b16 %v1794
      %v1875 = vunpack.c.l.b16 %v1795
      %v1876 = vunpack.c.l.b16 %v1796
      %v1877 = vunpack.c.l.b16 %v1797
      %v1878 = vunpack.c.l.b16 %v1798
      %v1879 = vunpack.c.h.b16 %v1795
      %v1880 = vunpack.c.h.b16 %v1796
      %v1881 = vunpack.c.h.b16 %v1797
      %v1882 = vunpack.c.h.b16 %v1798
      %v1883 = vunpack.c.l.b16 %v1799
      %v1884 = vunpack.c.l.b16 %v1800
      %v1885 = vunpack.c.l.b16 %v1801
      %v1886 = vunpack.c.l.b16 %v1802
      %v1887 = vunpack.c.h.b16 %v1799
      %v1888 = vunpack.c.h.b16 %v1800
      %v1889 = vunpack.c.h.b16 %v1801
      %v1890 = vunpack.c.h.b16 %v1802
      %v1891 = vunpack.c.l.b16 %v1803
      %v1892 = vunpack.c.l.b16 %v1804
      %v1893 = vunpack.c.l.b16 %v1805
      %v1894 = vunpack.c.l.b16 %v1806
      %v1895 = vunpack.c.h.b16 %v1803
      %v1896 = vunpack.c.h.b16 %v1804
      %v1897 = vunpack.c.h.b16 %v1805
      %v1898 = vunpack.c.h.b16 %v1806
      %v1899 = vunpack.c.l.b16 %v1807
      %v1900 = vunpack.c.l.b16 %v1808
      %v1901 = vunpack.c.l.b16 %v1809
      %v1902 = vunpack.c.l.b16 %v1810
      %v1903 = vunpack.c.h.b16 %v1807
      %v1904 = vunpack.c.h.b16 %v1808
      %v1905 = vunpack.c.h.b16 %v1809
      %v1906 = vunpack.c.h.b16 %v1810
      %v1907 = vpack.c.b16 %v1844, %v1843
      %v1908 = vpack.c.b16 %v1846, %v1845
      %v1909 = vpack.c.b16 %v1848, %v1847
      %v1910 = vpack.c.b16 %v1850, %v1849
      %v1911 = vpack.c.b16 %v1852, %v1851
      %v1912 = vpack.c.b16 %v1854, %v1853
      %v1913 = vpack.c.b16 %v1856, %v1855
      %v1914 = vpack.c.b16 %v1858, %v1857
      %v1915 = vpack.c.b16 %v1860, %v1859
      %v1916 = vpack.c.b16 %v1862, %v1861
      %v1917 = vpack.c.b16 %v1864, %v1863
      %v1918 = vpack.c.b16 %v1866, %v1865
      %v1919 = vpack.c.b16 %v1868, %v1867
      %v1920 = vpack.c.b16 %v1870, %v1869
      %v1921 = vpack.c.b16 %v1872, %v1871
      %v1922 = vpack.c.b16 %v1874, %v1873
      %v1923 = vpack.c.b16 %v1876, %v1875
      %v1924 = vpack.c.b16 %v1878, %v1877
      %v1925 = vpack.c.b16 %v1880, %v1879
      %v1926 = vpack.c.b16 %v1882, %v1881
      %v1927 = vpack.c.b16 %v1884, %v1883
      %v1928 = vpack.c.b16 %v1886, %v1885
      %v1929 = vpack.c.b16 %v1888, %v1887
      %v1930 = vpack.c.b16 %v1890, %v1889
      %v1931 = vpack.c.b16 %v1892, %v1891
      %v1932 = vpack.c.b16 %v1894, %v1893
      %v1933 = vpack.c.b16 %v1896, %v1895
      %v1934 = vpack.c.b16 %v1898, %v1897
      %v1935 = vpack.c.b16 %v1900, %v1899
      %v1936 = vpack.c.b16 %v1902, %v1901
      %v1937 = vpack.c.b16 %v1904, %v1903
      %v1938 = vpack.c.b16 %v1906, %v1905
      %1971 = vst [vmem:[#allocation8] sm:$0xff] %v1907
      %1972 = vst [vmem:[#allocation8 + $0x8] sm:$0xff] %v1908
      %1973 = vst [vmem:[#allocation8 + $0x10] sm:$0xff] %v1909
      %1974 = vst [vmem:[#allocation8 + $0x18] sm:$0xff] %v1910
      %1975 = vst [vmem:[#allocation8 + $0x20] sm:$0xff] %v1911
      %1976 = vst [vmem:[#allocation8 + $0x28] sm:$0xff] %v1912
      %1977 = vst [vmem:[#allocation8 + $0x30] sm:$0xff] %v1913
      %1978 = vst [vmem:[#allocation8 + $0x38] sm:$0xff] %v1914
      %1979 = vst [vmem:[#allocation8 + $0x40] sm:$0xff] %v1915
      %1980 = vst [vmem:[#allocation8 + $0x48] sm:$0xff] %v1916
      %1981 = vst [vmem:[#allocation8 + $0x50] sm:$0xff] %v1917
      %1982 = vst [vmem:[#allocation8 + $0x58] sm:$0xff] %v1918
      %1983 = vst [vmem:[#allocation8 + $0x60] sm:$0xff] %v1919
      %1984 = vst [vmem:[#allocation8 + $0x68] sm:$0xff] %v1920
      %1985 = vst [vmem:[#allocation8 + $0x70] sm:$0xff] %v1921
      %1986 = vst [vmem:[#allocation8 + $0x78] sm:$0xff] %v1922
      %1987 = vst [vmem:[#allocation8 + $0x80] sm:$0xff] %v1923
      %1988 = vst [vmem:[#allocation8 + $0x88] sm:$0xff] %v1924
      %1989 = vst [vmem:[#allocation8 + $0x90] sm:$0xff] %v1925
      %1990 = vst [vmem:[#allocation8 + $0x98] sm:$0xff] %v1926
      %1991 = vst [vmem:[#allocation8 + $0xa0] sm:$0xff] %v1927
      %1992 = vst [vmem:[#allocation8 + $0xa8] sm:$0xff] %v1928
      %1993 = vst [vmem:[#allocation8 + $0xb0] sm:$0xff] %v1929
      %1994 = vst [vmem:[#allocation8 + $0xb8] sm:$0xff] %v1930
      %1995 = vst [vmem:[#allocation8 + $0xc0] sm:$0xff] %v1931
      %1996 = vst [vmem:[#allocation8 + $0xc8] sm:$0xff] %v1932
      %1997 = vst [vmem:[#allocation8 + $0xd0] sm:$0xff] %v1933
      %1998 = vst [vmem:[#allocation8 + $0xd8] sm:$0xff] %v1934
      %1999 = vst [vmem:[#allocation8 + $0xe0] sm:$0xff] %v1935
      %2000 = vst [vmem:[#allocation8 + $0xe8] sm:$0xff] %v1936
      %2001 = vst [vmem:[#allocation8 + $0xf0] sm:$0xff] %v1937
      %2002 = vst [vmem:[#allocation8 + $0xf8] sm:$0xff] %v1938
    $region25: #{tpu_custom_call.1} parent=1 // pred_fallthru
      _
    // Predicated region
    $region26: #{tpu_custom_call.1} parent=1 // pred_check
      _
    $region27: #{tpu_custom_call.1} parent=1 // pred_check_branch
      %2004 = sbr.rel (0) target = $region29
    $region28: #{tpu_custom_call.1} parent=1 // pred_region
      %s2006 = ssub.s32 4096, 4096
      %2007 = vsyncadd [#allocation5], %s2006
      %s2008 = sshll.u32 [#allocation8], 4
      %s2009 = int_to_ptr.vmem [resolvable:$true] %s2008
      %2014 = dma.vmem_to_hbm [thread:$0]  %s2009, 4096, %s2, [#allocation5], 256, 256, 16
    $region29: #{tpu_custom_call.1} parent=1 // pred_fallthru
      _
    // Predicated region
    $region30: #{tpu_custom_call.1} parent=1 // pred_check
      _
    $region31: #{tpu_custom_call.1} parent=1 // pred_check_branch
      %2016 = sbr.rel (0) target = $region33
    $region32: #{tpu_custom_call.1} parent=1 // pred_region
      %2017 = dma.done [#allocation5], 4096
    $region33: #{tpu_custom_call.1} parent=1 // pred_fallthru
      _
    %2018 = vsyncpa [#allocation4], 1
    %2019 = vsyncpa [#allocation7], 1
    %2020 = vsyncpa [#allocation5], 1

</llo_original>
